<compile_context>
chip_gen: v6e
topology: v6e:2x2x1
jax: 0.10.0
libtpu: 0.0.40
codegen_flags: <defaults>
</compile_context>

<pallas_src>
import jax
import jax.numpy as jnp
from jax.experimental import pallas as pl
from jax.experimental.pallas import tpu as pltpu

_SUBLANE = 8
_SQUEEZED = pl.Squeezed() if hasattr(pl, "Squeezed") else None  # None == squeezed dim


def _round_up(x, m):
    return (x + m - 1) // m * m


def _concat_squash_kernel(x_ref, wl_ref, gate_ref, bias_ref, o_ref):
    """One (batch b, N-tile) block: (x @ Wl) * gate + eff_bias.

    x_ref: (TN, dim_in); wl_ref: (dim_in, dim_out);
    gate_ref / bias_ref: (1, dim_out) f32, broadcast over TN rows;
    o_ref: (TN, dim_out).
    """
    h = jnp.dot(x_ref[...], wl_ref[...], preferred_element_type=jnp.float32)
    o_ref[...] = (h * gate_ref[...] + bias_ref[...]).astype(o_ref.dtype)


def concat_squash_linear(ctx, x, params, *, tile_n=None, single_buffer_weights=True):
    """ctx: (B, 1, dim_ctx); x: (B, N, dim_in) -> (B, N, dim_out)."""
    wl, bl, wg, bg, wb = params
    B, N, dim_in = x.shape
    dim_out = wl.shape[1]

    # --- hoist the tiny hyper projection out of the kernel (O(B*dim_ctx*dim_out)):
    #     gate = sigmoid(ctx@Wg + bg);  eff_bias = bl*gate + ctx@Wb
    #     so the kernel only needs (x@Wl)*gate + eff_bias  (same math, reassociated).
    ctx32 = ctx.astype(jnp.float32)
    gate = jax.nn.sigmoid(ctx32 @ wg.astype(jnp.float32) + bg.astype(jnp.float32))
    eff_bias = bl.astype(jnp.float32) * gate + ctx32 @ wb.astype(jnp.float32)
    # gate, eff_bias: (B, 1, dim_out) float32

    itemsize = jnp.dtype(x.dtype).itemsize

    # --- tile N: target ~2 MiB per output tile (sublane aligned); edge tile is partial.
    if tile_n is None:
        tile_n = (2 << 20) // max(1, dim_out * itemsize)
    tile_n = max(_SUBLANE, min(int(tile_n), 4096))
    tn = min(_round_up(tile_n, _SUBLANE), _round_up(N, _SUBLANE))
    n_tiles = pl.cdiv(N, tn)

    # --- VMEM budget, generation aware (v7x: 64 MiB physical; v5e/v6e: 128 MiB).
    try:
        phys = pltpu.get_tpu_info().vmem_capacity_bytes
        cap = min(int(phys) * 3 // 4, 96 << 20)
    except Exception:  # info query unavailable -> conservative (fits v7x)
        cap = 48 << 20
    w_bufs = 1 if single_buffer_weights else 2
    est = (2 * tn * (dim_in + dim_out) * itemsize               # pipelined x / out tiles
           + w_bufs * dim_in * dim_out * jnp.dtype(wl.dtype).itemsize
           + 2 * 2 * dim_out * 4)                               # gate + eff_bias blocks
    vmem_limit = int(min(max(16 << 20, 2 * est + (4 << 20)), cap))

    def run(use_buffered):
        if use_buffered:
            wl_spec = pl.BlockSpec((dim_in, dim_out), lambda b, n: (0, 0),
                                   pipeline_mode=pl.Buffered(1))
        else:
            wl_spec = pl.BlockSpec((dim_in, dim_out), lambda b, n: (0, 0))
        return pl.pallas_call(
            _concat_squash_kernel,
            out_shape=jax.ShapeDtypeStruct((B, N, dim_out), x.dtype),
            grid_spec=pltpu.PrefetchScalarGridSpec(
                num_scalar_prefetch=0,
                grid=(B, n_tiles),
                in_specs=[
                    pl.BlockSpec((_SQUEEZED, tn, dim_in), lambda b, n: (b, n, 0)),   # x
                    wl_spec,                                                         # Wl
                    pl.BlockSpec((_SQUEEZED, 1, dim_out), lambda b, n: (b, 0, 0)),   # gate
                    pl.BlockSpec((_SQUEEZED, 1, dim_out), lambda b, n: (b, 0, 0)),   # eff_bias
                ],
                out_specs=pl.BlockSpec((_SQUEEZED, tn, dim_out), lambda b, n: (b, n, 0)),
            ),
            compiler_params=pltpu.CompilerParams(
                dimension_semantics=("parallel", "parallel"),
                vmem_limit_bytes=vmem_limit,
            ),
        )(x, wl, gate, eff_bias)

    if single_buffer_weights and hasattr(pl, "Buffered"):
        try:
            return run(True)
        except Exception:
            # pl.Buffered(1) not supported by the installed jax/Mosaic; retry with
            # default double-buffered weights.  Genuine kernel/shape errors will
            # resurface from the retry below (no silent masking).
            pass
    return run(False)


def init_params(key, dim_in, dim_out, dim_ctx, dtype=jnp.float32):
    """Deterministic synthetic init (PyTorch-Linear-like uniform ranges)."""
    k1, k2, k3, k4, k5 = jax.random.split(key, 5)
    lim_l = 1.0 / jnp.sqrt(dim_in)
    lim_c = 1.0 / jnp.sqrt(dim_ctx)
    # stored pre-transposed: (in_features, out_features)
    wl = jax.random.uniform(k1, (dim_in, dim_out), dtype, -lim_l, lim_l)
    bl = jax.random.uniform(k2, (1, dim_out), dtype, -lim_l, lim_l)
    wg = jax.random.uniform(k3, (dim_ctx, dim_out), dtype, -lim_c, lim_c)
    bg = jax.random.uniform(k4, (1, dim_out), dtype, -lim_c, lim_c)
    wb = jax.random.uniform(k5, (dim_ctx, dim_out), dtype, -lim_c, lim_c)
    return wl, bl, wg, bg, wb


def reference(ctx, x, params):
    wl, bl, wg, bg, wb = params
    gate = jax.nn.sigmoid(ctx @ wg + bg)
    hbias = ctx @ wb
    return (x @ wl + bl) * gate + hbias


if __name__ == "__main__":
    B, N, dim_in, dim_out, dim_ctx = 2, 200, 16, 32, 8

    key = jax.random.PRNGKey(0)
    k_ctx, k_x, k_p = jax.random.split(key, 3)

    ctx = jax.random.normal(k_ctx, (B, 1, dim_ctx), jnp.float32)
    x = jax.random.normal(k_x, (B, N, dim_in), jnp.float32)
    params = init_params(k_p, dim_in, dim_out, dim_ctx)

    # tile_n=128 -> grid (B=2, n_tiles=2) with a partial edge tile (200 = 128 + 72);
    # dim_out=32 (< 128) exercises the unpadded, masked-store output path.
    out = jax.block_until_ready(concat_squash_linear(ctx, x, params, tile_n=128))

    ref = reference(ctx, x, params)
    assert out.shape == (B, N, dim_out)
    assert jnp.allclose(out, ref, atol=1e-5, rtol=1e-5), "mismatch vs JAX reference"

    print("KERNEL_OK")
</pallas_src>

<mosaic_0001>
module attributes {stable_mosaic.version = 11 : i64} {
  func.func @_concat_squash_kernel(%arg0: i32, %arg1: i32, %arg2: memref<1x128x16xf32, #tpu.memory_space<vmem>>, %arg3: memref<16x32xf32, #tpu.memory_space<vmem>>, %arg4: memref<1x1x32xf32, #tpu.memory_space<vmem>>, %arg5: memref<1x1x32xf32, #tpu.memory_space<vmem>>, %arg6: memref<1x128x32xf32, #tpu.memory_space<vmem>>) attributes {dimension_semantics = [#tpu.dimension_semantics<parallel>, #tpu.dimension_semantics<parallel>], iteration_bounds = array<i64: 2, 2>, scalar_prefetch = 0 : i64, scratch_operands = 0 : i64, tpu.core_type = #tpu.core_type<tc>, window_params = [{transform_indices = @transform_0, window_bounds = array<i64: 1, 128, 16>}, {pipeline_mode = #tpu.pipeline_mode<synchronous>, transform_indices = @transform_1, window_bounds = array<i64: 16, 32>}, {transform_indices = @transform_2, window_bounds = array<i64: 1, 1, 32>}, {transform_indices = @transform_3, window_bounds = array<i64: 1, 1, 32>}, {transform_indices = @transform_4, window_bounds = array<i64: 1, 128, 32>}]} {
    %c0 = arith.constant 0 : index
    %c0_0 = arith.constant 0 : index
    %c0_1 = arith.constant 0 : index
    %0 = vector.load %arg2[%c0, %c0_0, %c0_1] : memref<1x128x16xf32, #tpu.memory_space<vmem>>, vector<1x128x16xf32>
    %1 = vector.shape_cast %0 : vector<1x128x16xf32> to vector<128x16xf32>
    %c0_2 = arith.constant 0 : index
    %c0_3 = arith.constant 0 : index
    %2 = vector.load %arg3[%c0_2, %c0_3] : memref<16x32xf32, #tpu.memory_space<vmem>>, vector<16x32xf32>
    %cst = arith.constant dense<0.000000e+00> : vector<128x32xf32>
    %3 = tpu.matmul %1, %2, %cst {dimension_numbers = #tpu.dot_dimension_numbers<[1], [0], [0], [1], [0, 0, 1, 1], [], []>} : vector<128x16xf32>, vector<16x32xf32>, vector<128x32xf32> -> vector<128x32xf32>
    %c0_4 = arith.constant 0 : index
    %c0_5 = arith.constant 0 : index
    %c0_6 = arith.constant 0 : index
    %4 = vector.load %arg4[%c0_4, %c0_5, %c0_6] : memref<1x1x32xf32, #tpu.memory_space<vmem>>, vector<1x1x32xf32>
    %5 = vector.shape_cast %4 : vector<1x1x32xf32> to vector<1x32xf32>
    %6 = vector.broadcast %5 : vector<1x32xf32> to vector<128x32xf32>
    %7 = arith.mulf %3, %6 : vector<128x32xf32>
    %c0_7 = arith.constant 0 : index
    %c0_8 = arith.constant 0 : index
    %c0_9 = arith.constant 0 : index
    %8 = vector.load %arg5[%c0_7, %c0_8, %c0_9] : memref<1x1x32xf32, #tpu.memory_space<vmem>>, vector<1x1x32xf32>
    %9 = vector.shape_cast %8 : vector<1x1x32xf32> to vector<1x32xf32>
    %10 = vector.broadcast %9 : vector<1x32xf32> to vector<128x32xf32>
    %11 = arith.addf %7, %10 : vector<128x32xf32>
    %c0_10 = arith.constant 0 : index
    %c0_11 = arith.constant 0 : index
    %c0_12 = arith.constant 0 : index
    %12 = vector.load %arg6[%c0_10, %c0_11, %c0_12] : memref<1x128x32xf32, #tpu.memory_space<vmem>>, vector<1x128x32xf32>
    %13 = vector.shape_cast %12 : vector<1x128x32xf32> to vector<128x32xf32>
    %14 = vector.shape_cast %11 : vector<128x32xf32> to vector<1x128x32xf32>
    tpu.vector_store %arg6[%c0_10, %c0_11, %c0_12], %14 {strides = array<i32>} : memref<1x128x32xf32, #tpu.memory_space<vmem>>, vector<1x128x32xf32>,
    return
  }
  func.func @transform_0(%arg0: i32, %arg1: i32) -> (i32, i32, i32) {
    %c0_i32 = arith.constant 0 : i32
    %c0_i32_0 = arith.constant 0 : i32
    return %arg0, %arg1, %c0_i32 : i32, i32, i32
  }
  func.func @transform_1(%arg0: i32, %arg1: i32) -> (i32, i32) {
    %c0_i32 = arith.constant 0 : i32
    %c0_i32_0 = arith.constant 0 : i32
    %c0_i32_1 = arith.constant 0 : i32
    return %c0_i32, %c0_i32_0 : i32, i32
  }
  func.func @transform_2(%arg0: i32, %arg1: i32) -> (i32, i32, i32) {
    %c0_i32 = arith.constant 0 : i32
    %c0_i32_0 = arith.constant 0 : i32
    %c0_i32_1 = arith.constant 0 : i32
    return %arg0, %c0_i32, %c0_i32_0 : i32, i32, i32
  }
  func.func @transform_3(%arg0: i32, %arg1: i32) -> (i32, i32, i32) {
    %c0_i32 = arith.constant 0 : i32
    %c0_i32_0 = arith.constant 0 : i32
    %c0_i32_1 = arith.constant 0 : i32
    return %arg0, %c0_i32, %c0_i32_0 : i32, i32, i32
  }
  func.func @transform_4(%arg0: i32, %arg1: i32) -> (i32, i32, i32) {
    %c0_i32 = arith.constant 0 : i32
    %c0_i32_0 = arith.constant 0 : i32
    return %arg0, %arg1, %c0_i32 : i32, i32, i32
  }
}

module attributes {stable_mosaic.version = 11 : i64} {
  func.func @_concat_squash_kernel(%arg0: i32, %arg1: i32, %arg2: memref<1x128x16xf32, #tpu.memory_space<vmem>>, %arg3: memref<16x32xf32, #tpu.memory_space<vmem>>, %arg4: memref<1x1x32xf32, #tpu.memory_space<vmem>>, %arg5: memref<1x1x32xf32, #tpu.memory_space<vmem>>, %arg6: memref<1x128x32xf32, #tpu.memory_space<vmem>>) attributes {dimension_semantics = [#tpu.dimension_semantics<parallel>, #tpu.dimension_semantics<parallel>], iteration_bounds = array<i64: 2, 2>, scalar_prefetch = 0 : i64, scratch_operands = 0 : i64, tpu.core_type = #tpu.core_type<tc>, window_params = [{transform_indices = @transform_0, window_bounds = array<i64: 1, 128, 16>}, {pipeline_mode = #tpu.pipeline_mode<synchronous>, transform_indices = @transform_1, window_bounds = array<i64: 16, 32>}, {transform_indices = @transform_2, window_bounds = array<i64: 1, 1, 32>}, {transform_indices = @transform_3, window_bounds = array<i64: 1, 1, 32>}, {transform_indices = @transform_4, window_bounds = array<i64: 1, 128, 32>}]} {
    %c0 = arith.constant 0 : index
    %c0_0 = arith.constant 0 : index
    %c0_1 = arith.constant 0 : index
    %0 = vector.load %arg2[%c0, %c0_0, %c0_1] : memref<1x128x16xf32, #tpu.memory_space<vmem>>, vector<1x128x16xf32>
    %1 = vector.shape_cast %0 : vector<1x128x16xf32> to vector<128x16xf32>
    %c0_2 = arith.constant 0 : index
    %c0_3 = arith.constant 0 : index
    %2 = vector.load %arg3[%c0_2, %c0_3] : memref<16x32xf32, #tpu.memory_space<vmem>>, vector<16x32xf32>
    %cst = arith.constant dense<0.000000e+00> : vector<128x32xf32>
    %3 = tpu.matmul %1, %2, %cst {dimension_numbers = #tpu.dot_dimension_numbers<[1], [0], [0], [1], [0, 0, 1, 1], [], []>} : vector<128x16xf32>, vector<16x32xf32>, vector<128x32xf32> -> vector<128x32xf32>
    %c0_4 = arith.constant 0 : index
    %c0_5 = arith.constant 0 : index
    %c0_6 = arith.constant 0 : index
    %4 = vector.load %arg4[%c0_4, %c0_5, %c0_6] : memref<1x1x32xf32, #tpu.memory_space<vmem>>, vector<1x1x32xf32>
    %5 = vector.shape_cast %4 : vector<1x1x32xf32> to vector<1x32xf32>
    %6 = vector.broadcast %5 : vector<1x32xf32> to vector<128x32xf32>
    %7 = arith.mulf %3, %6 : vector<128x32xf32>
    %c0_7 = arith.constant 0 : index
    %c0_8 = arith.constant 0 : index
    %c0_9 = arith.constant 0 : index
    %8 = vector.load %arg5[%c0_7, %c0_8, %c0_9] : memref<1x1x32xf32, #tpu.memory_space<vmem>>, vector<1x1x32xf32>
    %9 = vector.shape_cast %8 : vector<1x1x32xf32> to vector<1x32xf32>
    %10 = vector.broadcast %9 : vector<1x32xf32> to vector<128x32xf32>
    %11 = arith.addf %7, %10 : vector<128x32xf32>
    %c0_10 = arith.constant 0 : index
    %c0_11 = arith.constant 0 : index
    %c0_12 = arith.constant 0 : index
    %12 = vector.load %arg6[%c0_10, %c0_11, %c0_12] : memref<1x128x32xf32, #tpu.memory_space<vmem>>, vector<1x128x32xf32>
    %13 = vector.shape_cast %12 : vector<1x128x32xf32> to vector<128x32xf32>
    %14 = vector.shape_cast %11 : vector<128x32xf32> to vector<1x128x32xf32>
    tpu.vector_store %arg6[%c0_10, %c0_11, %c0_12], %14 {strides = array<i32>} : memref<1x128x32xf32, #tpu.memory_space<vmem>>, vector<1x128x32xf32>,
    return
  }
  func.func @transform_0(%arg0: i32, %arg1: i32) -> (i32, i32, i32) {
    %c0_i32 = arith.constant 0 : i32
    %c0_i32_0 = arith.constant 0 : i32
    return %arg0, %arg1, %c0_i32 : i32, i32, i32
  }
  func.func @transform_1(%arg0: i32, %arg1: i32) -> (i32, i32) {
    %c0_i32 = arith.constant 0 : i32
    %c0_i32_0 = arith.constant 0 : i32
    %c0_i32_1 = arith.constant 0 : i32
    return %c0_i32, %c0_i32_0 : i32, i32
  }
  func.func @transform_2(%arg0: i32, %arg1: i32) -> (i32, i32, i32) {
    %c0_i32 = arith.constant 0 : i32
    %c0_i32_0 = arith.constant 0 : i32
    %c0_i32_1 = arith.constant 0 : i32
    return %arg0, %c0_i32, %c0_i32_0 : i32, i32, i32
  }
  func.func @transform_3(%arg0: i32, %arg1: i32) -> (i32, i32, i32) {
    %c0_i32 = arith.constant 0 : i32
    %c0_i32_0 = arith.constant 0 : i32
    %c0_i32_1 = arith.constant 0 : i32
    return %arg0, %c0_i32, %c0_i32_0 : i32, i32, i32
  }
  func.func @transform_4(%arg0: i32, %arg1: i32) -> (i32, i32, i32) {
    %c0_i32 = arith.constant 0 : i32
    %c0_i32_0 = arith.constant 0 : i32
    return %arg0, %arg1, %c0_i32 : i32, i32, i32
  }
}

</mosaic_0001>

<llo_original>
// kernel: tpu_custom_call.1
$region0: #{tpu_custom_call.1}
  #allocation0 [shape = 'u32[]', space=smem, size = 0x4, offset = 0x4, fixed_abs, tag = 'smem constant byte address 0x4 - core index']
  #allocation1 [shape = 'u32[144,128]{1,0:T(1,128)}', space=vmem, size = 0x12000, scoped, tag = 'internal scratch']
  %s0 = inlined_call_operand.vmem [shape: f32[2,200,16], index: 0, kind: input, shape index: {}]
  %s1 = inlined_call_operand.vmem [shape: f32[16,32], index: 1, kind: input, shape index: {}]
  %s2 = inlined_call_operand.vmem [shape: f32[2,1,32], index: 2, kind: input, shape index: {}]
  %s3 = inlined_call_operand.vmem [shape: f32[2,1,32], index: 3, kind: input, shape index: {}]
  %s4 = inlined_call_operand.vmem [shape: f32[2,200,32], index: 4, kind: output, shape index: {}]
  %s5 = sld [smem:[#allocation0]]
  $region97: #{tpu_custom_call.1} parent=0
    _
  %s7 = ssub.s32 1, %s5
  %s8 = scalar_select 0, %s7, %s5
  $region1: #{tpu_custom_call.1} parent=0
    #allocation2 [shape = 'u8[131072]{0}', space=vmem, size = 0x20000, scoped, tag = 'output window, operand 0']
    loop: start=0, step=1, limit=6
    $region2: #{tpu_custom_call.1} parent=1 // loop_pre_header
      _
    $region3: #{tpu_custom_call.1} parent=1 // loop_header
      %s10 = sphi 0, %s14
      %p11 = scmp.ge.s32.totalorder %s10, 6
      %s17 = sphi 0, %s29
      %s18 = sphi 0, %s25
      %s19 = sphi 0, %s17
      %s20 = sphi 0, %s18
      %s21 = sphi 0, %s19
      %s22 = sphi 0, %s20
      %s34 = sphi 0, %s36
      %s37 = sphi 0, %s34
      %s38 = sphi 0, %s37
      %s54 = sphi 0, %s38
      %s58 = sphi 0, %s58
      %s60 = sphi 0, %s58
      %s61 = sphi 0, %s60
      %s75 = sphi 0, %s61
      %s81 = sphi 0, %s83
      %s84 = sphi 0, %s81
      %s85 = sphi 0, %s84
      %s101 = sphi 0, %s85
      %s107 = sphi 0, %s109
      %s110 = sphi 0, %s107
      %s111 = sphi 0, %s110
      %s127 = sphi 0, %s111
      %s135 = sphi 0, %s137
      %s138 = sphi 0, %s135
      %s139 = sphi 0, %s138
      %s155 = sphi 0, %s139
    $region4: #{tpu_custom_call.1} parent=1 // loop_header_branch
      %13 = sbr.rel (%p11) target = $region8
    $region5: #{tpu_custom_call.1} parent=1 // loop_body
      %s15 = ssub.s32 %s10, 1
      %s16 = ssub.s32 %s10, 2
      %s23 = sadd.s32 1, %s18
      %p24 = scmp.ge.s32.totalorder %s23, 2
      %s25 = scalar_select %p24, 0, %s23
      %s26 = sadd.s32 1, %s17
      %s27 = scalar_select %p24, %s26, %s17
      %p28 = scmp.ge.s32.totalorder %s27, 2
      %s29 = scalar_select %p28, 0, %s27
      %s30 = ssub.s32 %s17, %s29
      %s31 = ssub.s32 %s18, %s25
      %s32 = sor.u32 %s30, %s31
      %p33 = scmp.eq.s32.totalorder %s32, 0
      %s35 = sadd.s32 %s34, 1
      %s36 = scalar_select %p33, %s34, %s35
      %p39 = pneg %p33
      %p40 = scmp.eq.s32.totalorder %s10, 3
      %p41 = por %p39, %p40
      %p42 = scmp.ne.s32.totalorder %s34, %s37
      %p43 = scmp.eq.s32.totalorder %s10, 0
      %p44 = por %p42, %p43
      %p45 = scmp.ne.s32.totalorder %s34, %s37
      %p46 = scmp.eq.s32.totalorder %s15, 3
      %p47 = por %p45, %p46
      %p48 = scmp.ne.s32.totalorder %s37, %s38
      %p49 = scmp.eq.s32.totalorder %s15, 0
      %p50 = por %p48, %p49
      %p51 = scmp.ne.s32.totalorder %s37, %s38
      %p52 = scmp.eq.s32.totalorder %s16, 3
      %p53 = por %p51, %p52
      %p55 = scmp.ne.s32.totalorder %s38, %s54
      %p56 = scmp.eq.s32.totalorder %s16, 0
      %p57 = por %p55, %p56
      %s59 = sadd.s32 %s58, 1
      %p62 = scmp.eq.s32.totalorder %s10, 3
      %p63 = scmp.ne.s32.totalorder %s58, %s60
      %p64 = scmp.eq.s32.totalorder %s10, 0
      %p65 = por %p63, %p64
      %p66 = scmp.ne.s32.totalorder %s58, %s60
      %p67 = scmp.eq.s32.totalorder %s15, 3
      %p68 = por %p66, %p67
      %p69 = scmp.ne.s32.totalorder %s60, %s61
      %p70 = scmp.eq.s32.totalorder %s15, 0
      %p71 = por %p69, %p70
      %p72 = scmp.ne.s32.totalorder %s60, %s61
      %p73 = scmp.eq.s32.totalorder %s16, 3
      %p74 = por %p72, %p73
      %p76 = scmp.ne.s32.totalorder %s61, %s75
      %p77 = scmp.eq.s32.totalorder %s16, 0
      %p78 = por %p76, %p77
      %s79 = ssub.s32 %s17, %s29
      %p80 = scmp.eq.s32.totalorder %s79, 0
      %s82 = sadd.s32 %s81, 1
      %s83 = scalar_select %p80, %s81, %s82
      %p86 = pneg %p80
      %p87 = scmp.eq.s32.totalorder %s10, 3
      %p88 = por %p86, %p87
      %p89 = scmp.ne.s32.totalorder %s81, %s84
      %p90 = scmp.eq.s32.totalorder %s10, 0
      %p91 = por %p89, %p90
      %p92 = scmp.ne.s32.totalorder %s81, %s84
      %p93 = scmp.eq.s32.totalorder %s15, 3
      %p94 = por %p92, %p93
      %p95 = scmp.ne.s32.totalorder %s84, %s85
      %p96 = scmp.eq.s32.totalorder %s15, 0
      %p97 = por %p95, %p96
      %p98 = scmp.ne.s32.totalorder %s84, %s85
      %p99 = scmp.eq.s32.totalorder %s16, 3
      %p100 = por %p98, %p99
      %p102 = scmp.ne.s32.totalorder %s85, %s101
      %p103 = scmp.eq.s32.totalorder %s16, 0
      %p104 = por %p102, %p103
      %s105 = ssub.s32 %s17, %s29
      %p106 = scmp.eq.s32.totalorder %s105, 0
      %s108 = sadd.s32 %s107, 1
      %s109 = scalar_select %p106, %s107, %s108
      %p112 = pneg %p106
      %p113 = scmp.eq.s32.totalorder %s10, 3
      %p114 = por %p112, %p113
      %p115 = scmp.ne.s32.totalorder %s107, %s110
      %p116 = scmp.eq.s32.totalorder %s10, 0
      %p117 = por %p115, %p116
      %p118 = scmp.ne.s32.totalorder %s107, %s110
      %p119 = scmp.eq.s32.totalorder %s15, 3
      %p120 = por %p118, %p119
      %p121 = scmp.ne.s32.totalorder %s110, %s111
      %p122 = scmp.eq.s32.totalorder %s15, 0
      %p123 = por %p121, %p122
      %p124 = scmp.ne.s32.totalorder %s110, %s111
      %p125 = scmp.eq.s32.totalorder %s16, 3
      %p126 = por %p124, %p125
      %p128 = scmp.ne.s32.totalorder %s111, %s127
      %p129 = scmp.eq.s32.totalorder %s16, 0
      %p130 = por %p128, %p129
      %s131 = ssub.s32 %s17, %s29
      %s132 = ssub.s32 %s18, %s25
      %s133 = sor.u32 %s131, %s132
      %p134 = scmp.eq.s32.totalorder %s133, 0
      %s136 = sadd.s32 %s135, 1
      %s137 = scalar_select %p134, %s135, %s136
      %p140 = pneg %p134
      %p141 = scmp.eq.s32.totalorder %s10, 3
      %p142 = por %p140, %p141
      %p143 = scmp.ne.s32.totalorder %s135, %s138
      %p144 = scmp.eq.s32.totalorder %s10, 0
      %p145 = por %p143, %p144
      %p146 = scmp.ne.s32.totalorder %s135, %s138
      %p147 = scmp.eq.s32.totalorder %s15, 3
      %p148 = por %p146, %p147
      %p149 = scmp.ne.s32.totalorder %s138, %s139
      %p150 = scmp.eq.s32.totalorder %s15, 0
      %p151 = por %p149, %p150
      %p152 = scmp.ne.s32.totalorder %s138, %s139
      %p153 = scmp.eq.s32.totalorder %s16, 3
      %p154 = por %p152, %p153
      %p156 = scmp.ne.s32.totalorder %s139, %s155
      %p157 = scmp.eq.s32.totalorder %s16, 0
      %p158 = por %p156, %p157
      %p159 = scmp.le.s32.totalorder 1, %s10
      %p160 = scmp.lt.s32.totalorder %s10, 5
      %p161 = pnand %p159, %p160
      %p162 = pneg %p161
      // Predicated region
      $region9: #{tpu_custom_call.1} parent=5 // pred_check
        _
      $region10: #{tpu_custom_call.1} parent=5 // pred_check_branch
        %164 = sbr.rel (%p161) target = $region12
      $region11: #{tpu_custom_call.1} parent=5 // pred_region
        %s165 = ssub.s32 %s10, 1
        // Predicated region
        $region13: #{tpu_custom_call.1} parent=11 // pred_check
          %p166 = pneg %p71
        $region14: #{tpu_custom_call.1} parent=11 // pred_check_branch
          %168 = sbr.rel (%p166) target = $region16
        $region15: #{tpu_custom_call.1} parent=11 // pred_region
          _
        $region16: #{tpu_custom_call.1} parent=11 // pred_fallthru
          _
      $region12: #{tpu_custom_call.1} parent=5 // pred_fallthru
        _
      %p169 = scmp.lt.s32.totalorder %s10, 4
      // Predicated region
      $region17: #{tpu_custom_call.1} parent=5 // pred_check
        %p170 = pneg %p169
      $region18: #{tpu_custom_call.1} parent=5 // pred_check_branch
        %172 = sbr.rel (%p170) target = $region20
      $region19: #{tpu_custom_call.1} parent=5 // pred_region
        // Predicated region
        $region21: #{tpu_custom_call.1} parent=19 // pred_check
          %p173 = pneg %p44
        $region22: #{tpu_custom_call.1} parent=19 // pred_check_branch
          %175 = sbr.rel (%p173) target = $region24
        $region23: #{tpu_custom_call.1} parent=19 // pred_region
          %s176 = smul.u32 16, %s18
          %s177 = ssub.s32 25, %s176
          %p178 = scmp.lt.s32.totalorder %s177, 16
          %s179 = scalar_select %p178, %s177, 16
          %s180 = smul.u32 128, %s179
          %p181 = scmp.lt.s32.totalorder %s17, 1
          %s182 = scalar_select %p181, %s17, 1
          %p183 = scmp.lt.s32.totalorder %s176, 24
          %s184 = scalar_select %p183, %s176, 24
          %s185 = smul.addr %s182, 25
          %s186 = sadd.s32 %s184, %s185
          %s187 = smul.addr %s186, 8
          %s188 = scalar_lea.vmem %s0, %s187
          %s189 = smul.u32 16, %s18
          %s190 = ssub.s32 25, %s189
          %p191 = scmp.lt.s32.totalorder %s190, 16
          %s192 = scalar_select %p191, %s190, 16
          %s193 = smul.u32 128, %s192
        $region24: #{tpu_custom_call.1} parent=19 // pred_fallthru
          _
        // Predicated region
        $region25: #{tpu_custom_call.1} parent=19 // pred_check
          %p194 = pneg %p91
        $region26: #{tpu_custom_call.1} parent=19 // pred_check_branch
          %196 = sbr.rel (%p194) target = $region28
        $region27: #{tpu_custom_call.1} parent=19 // pred_region
          %p197 = scmp.lt.s32.totalorder %s17, 1
          %s198 = scalar_select %p197, %s17, 1
          %s199 = scalar_lea.vmem %s2, %s198
        $region28: #{tpu_custom_call.1} parent=19 // pred_fallthru
          _
        // Predicated region
        $region29: #{tpu_custom_call.1} parent=19 // pred_check
          %p200 = pneg %p117
        $region30: #{tpu_custom_call.1} parent=19 // pred_check_branch
          %202 = sbr.rel (%p200) target = $region32
        $region31: #{tpu_custom_call.1} parent=19 // pred_region
          %p203 = scmp.lt.s32.totalorder %s17, 1
          %s204 = scalar_select %p203, %s17, 1
          %s205 = scalar_lea.vmem %s3, %s204
        $region32: #{tpu_custom_call.1} parent=19 // pred_fallthru
          _
      $region20: #{tpu_custom_call.1} parent=5 // pred_fallthru
        _
      %p206 = scmp.le.s32.totalorder 1, %s10
      %p207 = scmp.lt.s32.totalorder %s10, 5
      %p208 = pnand %p206, %p207
      %p209 = pneg %p208
      // Predicated region
      $region33: #{tpu_custom_call.1} parent=5 // pred_check
        _
      $region34: #{tpu_custom_call.1} parent=5 // pred_check_branch
        %211 = sbr.rel (%p208) target = $region36
      $region35: #{tpu_custom_call.1} parent=5 // pred_region
        %s212 = ssub.s32 %s10, 1
        %s213 = smul.u32 16, %s20
        %s214 = ssub.s32 25, %s213
        %p215 = scmp.lt.s32.totalorder %s214, 16
        %s216 = scalar_select %p215, %s214, 16
        %s217 = smul.u32 128, %s216
        %p218 = scmp.lt.s32.totalorder %s19, 1
        %s219 = scalar_select %p218, %s19, 1
        %p220 = scmp.lt.s32.totalorder %s213, 24
        %s221 = scalar_select %p220, %s213, 24
        %s222 = smul.addr %s219, 25
        %s223 = sadd.s32 %s221, %s222
        %s224 = smul.addr %s223, 8
        %s225 = scalar_lea.vmem %s0, %s224
        %p226 = pneg %p50
        %p227 = pneg %p47
        %p228 = pneg %p71
        %p229 = pneg %p68
        %p230 = scmp.lt.s32.totalorder %s19, 1
        %s231 = scalar_select %p230, %s19, 1
        %s232 = scalar_lea.vmem %s2, %s231
        %p233 = pneg %p97
        %p234 = pneg %p94
        %p235 = scmp.lt.s32.totalorder %s19, 1
        %s236 = scalar_select %p235, %s19, 1
        %s237 = scalar_lea.vmem %s3, %s236
        %p238 = pneg %p123
        %p239 = pneg %p120
        %p240 = pneg %p151
        %p241 = pneg %p148
        %s242 = sand.u32 %s138, 1
        %s243 = sand.u32 %s138, 1
        %s244 = smul.addr %s243, 128
        %s245 = scalar_lea.vmem [#allocation2], %s244
        %s246 = smul.u32 16, %s20
        %s247 = ssub.s32 25, %s246
        %p248 = scmp.lt.s32.totalorder %s247, 16
        %s249 = scalar_select %p248, %s247, 16
        %s250 = smul.u32 128, %s249
        %p251 = scmp.lt.s32.totalorder %s19, 1
        %s252 = scalar_select %p251, %s19, 1
        %p253 = scmp.lt.s32.totalorder %s246, 24
        %s254 = scalar_select %p253, %s246, 24
        %s255 = smul.addr %s252, 25
        %s256 = sadd.s32 %s254, %s255
        %s257 = smul.addr %s256, 8
        %s258 = scalar_lea.vmem %s0, %s257
        %s259 = smul.u32 16, %s20
        %s260 = ssub.s32 25, %s259
        %p261 = scmp.lt.s32.totalorder %s260, 16
        %s262 = scalar_select %p261, %s260, 16
        %s263 = smul.u32 128, %s262
        %p264 = scmp.lt.s32.totalorder %s19, 1
        %s265 = scalar_select %p264, %s19, 1
        %s266 = scalar_lea.vmem %s2, %s265
        %p267 = scmp.lt.s32.totalorder %s19, 1
        %s268 = scalar_select %p267, %s19, 1
        %s269 = scalar_lea.vmem %s3, %s268
        %s270 = smul.u32 16, %s20
        %s271 = ssub.s32 25, %s270
        %p272 = scmp.lt.s32.totalorder %s271, 16
        %s273 = scalar_select %p272, %s271, 16
        %s274 = smul.u32 128, %s273
        %v275 = vld [vmem:[%s258] sm:$0xff]
        %v276 = vld [vmem:[%s258 + $0x8] sm:$0xff]
        %v277 = vld [vmem:[%s258 + $0x10] sm:$0xff]
        %v278 = vld [vmem:[%s258 + $0x18] sm:$0xff]
        %v279 = vld [vmem:[%s258 + $0x20] sm:$0xff]
        %v280 = vld [vmem:[%s258 + $0x28] sm:$0xff]
        %v281 = vld [vmem:[%s258 + $0x30] sm:$0xff]
        %v282 = vld [vmem:[%s258 + $0x38] sm:$0xff]
        %v283 = vld [vmem:[%s258 + $0x40] sm:$0xff]
        %v284 = vld [vmem:[%s258 + $0x48] sm:$0xff]
        %v285 = vld [vmem:[%s258 + $0x50] sm:$0xff]
        %v286 = vld [vmem:[%s258 + $0x58] sm:$0xff]
        %v287 = vld [vmem:[%s258 + $0x60] sm:$0xff]
        %v288 = vld [vmem:[%s258 + $0x68] sm:$0xff]
        %v289 = vld [vmem:[%s258 + $0x70] sm:$0xff]
        %v290 = vld [vmem:[%s258 + $0x78] sm:$0xff]
        %v291 = vld [vmem:[%s1] sm:$0xff]
        %v292 = vld [vmem:[%s1 + $0x8] sm:$0xff]
        %vm293 = vcmask 130048
        %v295 = vsel %vm293, %v275, 0
        %v298 = vsel %vm293, %v276, 0
        %v301 = vsel %vm293, %v277, 0
        %v304 = vsel %vm293, %v278, 0
        %v307 = vsel %vm293, %v279, 0
        %v310 = vsel %vm293, %v280, 0
        %v313 = vsel %vm293, %v281, 0
        %v316 = vsel %vm293, %v282, 0
        %v319 = vsel %vm293, %v283, 0
        %v322 = vsel %vm293, %v284, 0
        %v325 = vsel %vm293, %v285, 0
        %v328 = vsel %vm293, %v286, 0
        %v331 = vsel %vm293, %v287, 0
        %v334 = vsel %vm293, %v288, 0
        %v337 = vsel %vm293, %v289, 0
        %v340 = vsel %vm293, %v290, 0
        %342 = vmatprep.subr.mxu0 0.0
        %343 = vmatpush1.msra.mxu0 0.0
        %344 = vmatprep.subr.mxu0 0.0
        %345 = vmatpush1.msra.mxu0 0.0
        %346 = vmatprep.subr.mxu0 0.0
        %347 = vmatpush1.msra.mxu0 0.0
        %348 = vmatprep.subr.mxu0 0.0
        %349 = vmatpush1.msra.mxu0 0.0
        %350 = vmatprep.subr.mxu0 0.0
        %351 = vmatpush1.msra.mxu0 0.0
        %352 = vmatprep.subr.mxu0 0.0
        %353 = vmatpush1.msra.mxu0 0.0
        %354 = vmatprep.subr.mxu0 0.0
        %355 = vmatpush1.msra.mxu0 0.0
        %356 = vmatprep.subr.mxu0 0.0
        %357 = vmatpush1.msra.mxu0 0.0
        %358 = vmatprep.subr.mxu0 0.0
        %359 = vmatpush1.msra.mxu0 0.0
        %360 = vmatprep.subr.mxu0 0.0
        %361 = vmatpush1.msra.mxu0 0.0
        %362 = vmatprep.subr.mxu0 0.0
        %363 = vmatpush1.msra.mxu0 0.0
        %364 = vmatprep.subr.mxu0 0.0
        %365 = vmatpush1.msra.mxu0 0.0
        %366 = vmatprep.subr.mxu0 0.0
        %367 = vmatpush1.msra.mxu0 0.0
        %368 = vmatprep.subr.mxu0 0.0
        %369 = vmatpush1.msra.mxu0 0.0
        %370 = vmatprep.subr.mxu0 0.0
        %371 = vmatpush1.msra.mxu0 %v292
        %372 = vmatprep.subr.mxu0 0.0
        %373 = vmatpush1.msra.mxu0 %v291
        %374 = vmatprep.subr.mxu0 0.0
        %375 = vmatpush2.msra.mxu0 0.0
        %376 = vmatprep.subr.mxu0 0.0
        %377 = vmatpush2.msra.mxu0 0.0
        %378 = vmatprep.subr.mxu0 0.0
        %379 = vmatpush2.msra.mxu0 0.0
        %380 = vmatprep.subr.mxu0 0.0
        %381 = vmatpush2.msra.mxu0 0.0
        %382 = vmatprep.subr.mxu0 0.0
        %383 = vmatpush2.msra.mxu0 0.0
        %384 = vmatprep.subr.mxu0 0.0
        %385 = vmatpush2.msra.mxu0 0.0
        %386 = vmatprep.subr.mxu0 0.0
        %387 = vmatpush2.msra.mxu0 0.0
        %388 = vmatprep.subr.mxu0 0.0
        %389 = vmatpush2.msra.mxu0 0.0
        %390 = vmatprep.subr.mxu0 0.0
        %391 = vmatpush2.msra.mxu0 0.0
        %392 = vmatprep.subr.mxu0 0.0
        %393 = vmatpush2.msra.mxu0 0.0
        %394 = vmatprep.subr.mxu0 0.0
        %395 = vmatpush2.msra.mxu0 0.0
        %396 = vmatprep.subr.mxu0 0.0
        %397 = vmatpush2.msra.mxu0 0.0
        %398 = vmatprep.subr.mxu0 0.0
        %399 = vmatpush2.msra.mxu0 0.0
        %400 = vmatprep.subr.mxu0 0.0
        %401 = vmatpush2.msra.mxu0 0.0
        %402 = vmatprep.subr.mxu0 0.0
        %403 = vmatpush2.msra.mxu0 0.0
        %404 = vmatprep.subr.mxu0 0.0
        %405 = vmatpush2.msra.mxu0 0.0
        %406 = vmatprep.mubr.f32.mxu0 0.0
        %407 = vmatmul.mubr.f32.gmra.mxu0 %v295
        %v408 = vpop.f32.mrf.mxu0
        %v409 = vadd.f32 0.0, %v408
        %v410 = vpop.f32.mrf.mxu0
        %411 = vmatprep.mubr.f32.mxu0 0.0
        %412 = vmatmul.mubr.f32.gmra.mxu0 %v298
        %v413 = vpop.f32.mrf.mxu0
        %v414 = vadd.f32 0.0, %v413
        %v415 = vpop.f32.mrf.mxu0
        %416 = vmatprep.mubr.f32.mxu0 0.0
        %417 = vmatmul.mubr.f32.gmra.mxu0 %v301
        %v418 = vpop.f32.mrf.mxu0
        %v419 = vadd.f32 0.0, %v418
        %v420 = vpop.f32.mrf.mxu0
        %421 = vmatprep.mubr.f32.mxu0 0.0
        %422 = vmatmul.mubr.f32.gmra.mxu0 %v304
        %v423 = vpop.f32.mrf.mxu0
        %v424 = vadd.f32 0.0, %v423
        %v425 = vpop.f32.mrf.mxu0
        %426 = vmatprep.mubr.f32.mxu0 0.0
        %427 = vmatmul.mubr.f32.gmra.mxu0 %v307
        %v428 = vpop.f32.mrf.mxu0
        %v429 = vadd.f32 0.0, %v428
        %v430 = vpop.f32.mrf.mxu0
        %431 = vmatprep.mubr.f32.mxu0 0.0
        %432 = vmatmul.mubr.f32.gmra.mxu0 %v310
        %v433 = vpop.f32.mrf.mxu0
        %v434 = vadd.f32 0.0, %v433
        %v435 = vpop.f32.mrf.mxu0
        %436 = vmatprep.mubr.f32.mxu0 0.0
        %437 = vmatmul.mubr.f32.gmra.mxu0 %v313
        %v438 = vpop.f32.mrf.mxu0
        %v439 = vadd.f32 0.0, %v438
        %v440 = vpop.f32.mrf.mxu0
        %441 = vmatprep.mubr.f32.mxu0 0.0
        %442 = vmatmul.mubr.f32.gmra.mxu0 %v316
        %v443 = vpop.f32.mrf.mxu0
        %v444 = vadd.f32 0.0, %v443
        %v445 = vpop.f32.mrf.mxu0
        %446 = vmatprep.mubr.f32.mxu0 0.0
        %447 = vmatmul.mubr.f32.gmra.mxu0 %v319
        %v448 = vpop.f32.mrf.mxu0
        %v449 = vadd.f32 0.0, %v448
        %v450 = vpop.f32.mrf.mxu0
        %451 = vmatprep.mubr.f32.mxu0 0.0
        %452 = vmatmul.mubr.f32.gmra.mxu0 %v322
        %v453 = vpop.f32.mrf.mxu0
        %v454 = vadd.f32 0.0, %v453
        %v455 = vpop.f32.mrf.mxu0
        %456 = vmatprep.mubr.f32.mxu0 0.0
        %457 = vmatmul.mubr.f32.gmra.mxu0 %v325
        %v458 = vpop.f32.mrf.mxu0
        %v459 = vadd.f32 0.0, %v458
        %v460 = vpop.f32.mrf.mxu0
        %461 = vmatprep.mubr.f32.mxu0 0.0
        %462 = vmatmul.mubr.f32.gmra.mxu0 %v328
        %v463 = vpop.f32.mrf.mxu0
        %v464 = vadd.f32 0.0, %v463
        %v465 = vpop.f32.mrf.mxu0
        %466 = vmatprep.mubr.f32.mxu0 0.0
        %467 = vmatmul.mubr.f32.gmra.mxu0 %v331
        %v468 = vpop.f32.mrf.mxu0
        %v469 = vadd.f32 0.0, %v468
        %v470 = vpop.f32.mrf.mxu0
        %471 = vmatprep.mubr.f32.mxu0 0.0
        %472 = vmatmul.mubr.f32.gmra.mxu0 %v334
        %v473 = vpop.f32.mrf.mxu0
        %v474 = vadd.f32 0.0, %v473
        %v475 = vpop.f32.mrf.mxu0
        %476 = vmatprep.mubr.f32.mxu0 0.0
        %477 = vmatmul.mubr.f32.gmra.mxu0 %v337
        %v478 = vpop.f32.mrf.mxu0
        %v479 = vadd.f32 0.0, %v478
        %v480 = vpop.f32.mrf.mxu0
        %481 = vmatprep.mubr.f32.mxu0 0.0
        %482 = vmatmul.mubr.f32.gmra.mxu0 %v340
        %v483 = vpop.f32.mrf.mxu0
        %v484 = vadd.f32 0.0, %v483
        %v485 = vpop.f32.mrf.mxu0
        %486 = vdwg.mxu0
        %v487 = vld [vmem:[%s266] sm:$0x1]
        %v489 = vlaneseq
        %v490 = vshrl.u32 %v489, 7
        %v491 = vsub.s32 0, %v490
        %v492 = vrot.slane %v487, %v491
        %v494 = vmul.f32 %v409, %v492
        %v495 = vmul.f32 %v414, %v492
        %v496 = vmul.f32 %v419, %v492
        %v497 = vmul.f32 %v424, %v492
        %v498 = vmul.f32 %v429, %v492
        %v499 = vmul.f32 %v434, %v492
        %v500 = vmul.f32 %v439, %v492
        %v501 = vmul.f32 %v444, %v492
        %v502 = vmul.f32 %v449, %v492
        %v503 = vmul.f32 %v454, %v492
        %v504 = vmul.f32 %v459, %v492
        %v505 = vmul.f32 %v464, %v492
        %v506 = vmul.f32 %v469, %v492
        %v507 = vmul.f32 %v474, %v492
        %v508 = vmul.f32 %v479, %v492
        %v509 = vmul.f32 %v484, %v492
        %v510 = vld [vmem:[%s269] sm:$0x1]
        %v512 = vlaneseq
        %v513 = vshrl.u32 %v512, 7
        %v514 = vsub.s32 0, %v513
        %v515 = vrot.slane %v510, %v514
        %v517 = vadd.f32 %v494, %v515
        %v518 = vadd.f32 %v495, %v515
        %v519 = vadd.f32 %v496, %v515
        %v520 = vadd.f32 %v497, %v515
        %v521 = vadd.f32 %v498, %v515
        %v522 = vadd.f32 %v499, %v515
        %v523 = vadd.f32 %v500, %v515
        %v524 = vadd.f32 %v501, %v515
        %v525 = vadd.f32 %v502, %v515
        %v526 = vadd.f32 %v503, %v515
        %v527 = vadd.f32 %v504, %v515
        %v528 = vadd.f32 %v505, %v515
        %v529 = vadd.f32 %v506, %v515
        %v530 = vadd.f32 %v507, %v515
        %v531 = vadd.f32 %v508, %v515
        %v532 = vadd.f32 %v509, %v515
        %vm533 = vcmask 261120
        %534 = vst.msk [vmem:[%s245] sm:$0xff] %vm533, %v517
        %535 = vst.msk [vmem:[%s245 + $0x8] sm:$0xff] %vm533, %v518
        %536 = vst.msk [vmem:[%s245 + $0x10] sm:$0xff] %vm533, %v519
        %537 = vst.msk [vmem:[%s245 + $0x18] sm:$0xff] %vm533, %v520
        %538 = vst.msk [vmem:[%s245 + $0x20] sm:$0xff] %vm533, %v521
        %539 = vst.msk [vmem:[%s245 + $0x28] sm:$0xff] %vm533, %v522
        %540 = vst.msk [vmem:[%s245 + $0x30] sm:$0xff] %vm533, %v523
        %541 = vst.msk [vmem:[%s245 + $0x38] sm:$0xff] %vm533, %v524
        %542 = vst.msk [vmem:[%s245 + $0x40] sm:$0xff] %vm533, %v525
        %543 = vst.msk [vmem:[%s245 + $0x48] sm:$0xff] %vm533, %v526
        %544 = vst.msk [vmem:[%s245 + $0x50] sm:$0xff] %vm533, %v527
        %545 = vst.msk [vmem:[%s245 + $0x58] sm:$0xff] %vm533, %v528
        %546 = vst.msk [vmem:[%s245 + $0x60] sm:$0xff] %vm533, %v529
        %547 = vst.msk [vmem:[%s245 + $0x68] sm:$0xff] %vm533, %v530
        %548 = vst.msk [vmem:[%s245 + $0x70] sm:$0xff] %vm533, %v531
        %549 = vst.msk [vmem:[%s245 + $0x78] sm:$0xff] %vm533, %v532
        %s550 = sand.u32 %s138, 1
        %s551 = sand.u32 %s138, 1
        %s552 = smul.addr %s551, 128
        %s553 = scalar_lea.vmem [#allocation2], %s552
        // Predicated region
        $region37: #{tpu_custom_call.1} parent=35 // pred_check
          %p554 = pneg %p148
        $region38: #{tpu_custom_call.1} parent=35 // pred_check_branch
          %556 = sbr.rel (%p554) target = $region40
        $region39: #{tpu_custom_call.1} parent=35 // pred_region
          %s557 = smul.u32 16, %s20
          %s558 = ssub.s32 25, %s557
          %p559 = scmp.lt.s32.totalorder %s558, 16
          %s560 = scalar_select %p559, %s558, 16
          %s561 = smul.u32 128, %s560
          %p562 = scmp.ne.s32.totalorder 0, %s561
          %s563 = smul.addr %s19, 25
          %s564 = sadd.s32 %s557, %s563
          %s565 = smul.addr %s564, 8
          %s566 = scalar_lea.vmem %s4, %s565
          // Predicated region
          $region41: #{tpu_custom_call.1} parent=39 // pred_check
            %p567 = pneg %p562
          $region42: #{tpu_custom_call.1} parent=39 // pred_check_branch
            %569 = sbr.rel (%p567) target = $region44
          $region43: #{tpu_custom_call.1} parent=39 // pred_region
            // Predicated region
            $region45: #{tpu_custom_call.1} parent=43 // pred_check
              _
            $region46: #{tpu_custom_call.1} parent=43 // pred_check_branch
              %571 = sbr.rel (0) target = $region48
            $region47: #{tpu_custom_call.1} parent=43 // pred_region
              // Predicated region
              $region67: #{tpu_custom_call.1} parent=47 // pred_check
                _
              $region68: #{tpu_custom_call.1} parent=47 // pred_check_branch
                %651 = sbr.rel (0) target = $region70
              $region69: #{tpu_custom_call.1} parent=47 // pred_region
                %s652 = sshrl.u32 %s560, 4
                // While loop
                $region71: #{tpu_custom_call.1} parent=69 // loop_pre_header
                  _
                $region72: #{tpu_custom_call.1} parent=69 // loop_header
                  %s654 = sphi 0, %s656
                  %p655 = scmp.ge.s32.totalorder %s654, %s652
                  %s659 = sphi 0, %s696
                  %s660 = sphi %s553, %s699
                  %s661 = sphi %s566, %s700
                $region73: #{tpu_custom_call.1} parent=69 // loop_header_branch
                  %658 = sbr.rel (%p655) target = $region77
                $region74: #{tpu_custom_call.1} parent=69 // loop_body
                  %v662 = vld [vmem:[%s660] sm:$0xff]
                  %663 = vst [vmem:[%s661] sm:$0xff] %v662
                  %v664 = vld [vmem:[%s660 + $0x8] sm:$0xff]
                  %665 = vst [vmem:[%s661 + $0x8] sm:$0xff] %v664
                  %v666 = vld [vmem:[%s660 + $0x10] sm:$0xff]
                  %667 = vst [vmem:[%s661 + $0x10] sm:$0xff] %v666
                  %v668 = vld [vmem:[%s660 + $0x18] sm:$0xff]
                  %669 = vst [vmem:[%s661 + $0x18] sm:$0xff] %v668
                  %v670 = vld [vmem:[%s660 + $0x20] sm:$0xff]
                  %671 = vst [vmem:[%s661 + $0x20] sm:$0xff] %v670
                  %v672 = vld [vmem:[%s660 + $0x28] sm:$0xff]
                  %673 = vst [vmem:[%s661 + $0x28] sm:$0xff] %v672
                  %v674 = vld [vmem:[%s660 + $0x30] sm:$0xff]
                  %675 = vst [vmem:[%s661 + $0x30] sm:$0xff] %v674
                  %v676 = vld [vmem:[%s660 + $0x38] sm:$0xff]
                  %677 = vst [vmem:[%s661 + $0x38] sm:$0xff] %v676
                  %v678 = vld [vmem:[%s660 + $0x40] sm:$0xff]
                  %679 = vst [vmem:[%s661 + $0x40] sm:$0xff] %v678
                  %v680 = vld [vmem:[%s660 + $0x48] sm:$0xff]
                  %681 = vst [vmem:[%s661 + $0x48] sm:$0xff] %v680
                  %v682 = vld [vmem:[%s660 + $0x50] sm:$0xff]
                  %683 = vst [vmem:[%s661 + $0x50] sm:$0xff] %v682
                  %v684 = vld [vmem:[%s660 + $0x58] sm:$0xff]
                  %685 = vst [vmem:[%s661 + $0x58] sm:$0xff] %v684
                  %v686 = vld [vmem:[%s660 + $0x60] sm:$0xff]
                  %687 = vst [vmem:[%s661 + $0x60] sm:$0xff] %v686
                  %v688 = vld [vmem:[%s660 + $0x68] sm:$0xff]
                  %689 = vst [vmem:[%s661 + $0x68] sm:$0xff] %v688
                  %v690 = vld [vmem:[%s660 + $0x70] sm:$0xff]
                  %691 = vst [vmem:[%s661 + $0x70] sm:$0xff] %v690
                  %v692 = vld [vmem:[%s660 + $0x78] sm:$0xff]
                  %693 = vst [vmem:[%s661 + $0x78] sm:$0xff] %v692
                  %s694 = sadd.s32 1, %s659
                  %p695 = scmp.ge.s32.totalorder %s694, %s652
                  %s696 = scalar_select %p695, 0, %s694
                  %s697 = smul.u32 %s696, 128
                  %s698 = smul.u32 %s696, 128
                  %s699 = scalar_lea.vmem %s553, %s697 [#allocation2]
                  %s700 = scalar_lea.vmem %s566, %s698
                $region75: #{tpu_custom_call.1} parent=69 // loop_footer
                  %s656 = sadd.s32 %s654, 1
                $region76: #{tpu_custom_call.1} parent=69 // loop_footer_branch
                  %653 = sbr.rel target = $region72
                $region77: #{tpu_custom_call.1} parent=69 // loop_exit
                  _
                %s701 = sshrl.u32 %s560, 4
                %s702 = sand.u32 %s560, 15
                %s703 = smul.u32 %s701, 16
                %s704 = smul.u32 8, %s703
                %s705 = scalar_lea.vmem %s553, %s704 [#allocation2]
                %s706 = smul.u32 8, %s703
                %s707 = scalar_lea.vmem %s566, %s706
                // While loop
                $region78: #{tpu_custom_call.1} parent=69 // loop_pre_header
                  _
                $region79: #{tpu_custom_call.1} parent=69 // loop_header
                  %s709 = sphi 0, %s711
                  %p710 = scmp.ge.s32.totalorder %s709, %s702
                  %s714 = sphi 0, %s721
                  %s715 = sphi %s705, %s724
                  %s716 = sphi %s707, %s725
                $region80: #{tpu_custom_call.1} parent=69 // loop_header_branch
                  %713 = sbr.rel (%p710) target = $region84
                $region81: #{tpu_custom_call.1} parent=69 // loop_body
                  %v717 = vld [vmem:[%s715] sm:$0xff]
                  %718 = vst [vmem:[%s716] sm:$0xff] %v717
                  %s719 = sadd.s32 1, %s714
                  %p720 = scmp.ge.s32.totalorder %s719, %s702
                  %s721 = scalar_select %p720, 0, %s719
                  %s722 = smul.u32 %s721, 8
                  %s723 = smul.u32 %s721, 8
                  %s724 = scalar_lea.vmem %s705, %s722 [#allocation2]
                  %s725 = scalar_lea.vmem %s707, %s723
                $region82: #{tpu_custom_call.1} parent=69 // loop_footer
                  %s711 = sadd.s32 %s709, 1
                $region83: #{tpu_custom_call.1} parent=69 // loop_footer_branch
                  %708 = sbr.rel target = $region79
                $region84: #{tpu_custom_call.1} parent=69 // loop_exit
                  _
              $region70: #{tpu_custom_call.1} parent=47 // pred_fallthru
                _
              // Predicated region
              $region85: #{tpu_custom_call.1} parent=47 // pred_check
                _
              $region86: #{tpu_custom_call.1} parent=47 // pred_check_branch
                %727 = sbr.rel target = $region88
              $region87: #{tpu_custom_call.1} parent=47 // pred_region
                _
              $region88: #{tpu_custom_call.1} parent=47 // pred_fallthru
                _
            $region48: #{tpu_custom_call.1} parent=43 // pred_fallthru
              _
            // Predicated region
            $region49: #{tpu_custom_call.1} parent=43 // pred_check
              _
            $region50: #{tpu_custom_call.1} parent=43 // pred_check_branch
              %573 = sbr.rel target = $region52
            $region51: #{tpu_custom_call.1} parent=43 // pred_region
              %s575 = ssub.s32 256, 1
              %s576 = sshrl.u32 %s560, 4
              // While loop
              $region53: #{tpu_custom_call.1} parent=51 // loop_pre_header
                _
              $region54: #{tpu_custom_call.1} parent=51 // loop_header
                %s578 = sphi 0, %s580
                %p579 = scmp.ge.s32.totalorder %s578, %s576
                %s583 = sphi 0, %s620
                %s584 = sphi %s553, %s623
                %s585 = sphi %s566, %s624
              $region55: #{tpu_custom_call.1} parent=51 // loop_header_branch
                %582 = sbr.rel (%p579) target = $region59
              $region56: #{tpu_custom_call.1} parent=51 // loop_body
                %v586 = vld [vmem:[%s584] sm:%s575]
                %587 = vst [vmem:[%s585] sm:%s575] %v586
                %v588 = vld [vmem:[%s584 + $0x8] sm:%s575]
                %589 = vst [vmem:[%s585 + $0x8] sm:%s575] %v588
                %v590 = vld [vmem:[%s584 + $0x10] sm:%s575]
                %591 = vst [vmem:[%s585 + $0x10] sm:%s575] %v590
                %v592 = vld [vmem:[%s584 + $0x18] sm:%s575]
                %593 = vst [vmem:[%s585 + $0x18] sm:%s575] %v592
                %v594 = vld [vmem:[%s584 + $0x20] sm:%s575]
                %595 = vst [vmem:[%s585 + $0x20] sm:%s575] %v594
                %v596 = vld [vmem:[%s584 + $0x28] sm:%s575]
                %597 = vst [vmem:[%s585 + $0x28] sm:%s575] %v596
                %v598 = vld [vmem:[%s584 + $0x30] sm:%s575]
                %599 = vst [vmem:[%s585 + $0x30] sm:%s575] %v598
                %v600 = vld [vmem:[%s584 + $0x38] sm:%s575]
                %601 = vst [vmem:[%s585 + $0x38] sm:%s575] %v600
                %v602 = vld [vmem:[%s584 + $0x40] sm:%s575]
                %603 = vst [vmem:[%s585 + $0x40] sm:%s575] %v602
                %v604 = vld [vmem:[%s584 + $0x48] sm:%s575]
                %605 = vst [vmem:[%s585 + $0x48] sm:%s575] %v604
                %v606 = vld [vmem:[%s584 + $0x50] sm:%s575]
                %607 = vst [vmem:[%s585 + $0x50] sm:%s575] %v606
                %v608 = vld [vmem:[%s584 + $0x58] sm:%s575]
                %609 = vst [vmem:[%s585 + $0x58] sm:%s575] %v608
                %v610 = vld [vmem:[%s584 + $0x60] sm:%s575]
                %611 = vst [vmem:[%s585 + $0x60] sm:%s575] %v610
                %v612 = vld [vmem:[%s584 + $0x68] sm:%s575]
                %613 = vst [vmem:[%s585 + $0x68] sm:%s575] %v612
                %v614 = vld [vmem:[%s584 + $0x70] sm:%s575]
                %615 = vst [vmem:[%s585 + $0x70] sm:%s575] %v614
                %v616 = vld [vmem:[%s584 + $0x78] sm:%s575]
                %617 = vst [vmem:[%s585 + $0x78] sm:%s575] %v616
                %s618 = sadd.s32 1, %s583
                %p619 = scmp.ge.s32.totalorder %s618, %s576
                %s620 = scalar_select %p619, 0, %s618
                %s621 = smul.u32 %s620, 128
                %s622 = smul.u32 %s620, 128
                %s623 = scalar_lea.vmem %s553, %s621 [#allocation2]
                %s624 = scalar_lea.vmem %s566, %s622
              $region57: #{tpu_custom_call.1} parent=51 // loop_footer
                %s580 = sadd.s32 %s578, 1
              $region58: #{tpu_custom_call.1} parent=51 // loop_footer_branch
                %577 = sbr.rel target = $region54
              $region59: #{tpu_custom_call.1} parent=51 // loop_exit
                _
              %s625 = sshrl.u32 %s560, 4
              %s626 = sand.u32 %s560, 15
              %s627 = smul.u32 %s625, 16
              %s628 = smul.u32 8, %s627
              %s629 = scalar_lea.vmem %s553, %s628 [#allocation2]
              %s630 = smul.u32 8, %s627
              %s631 = scalar_lea.vmem %s566, %s630
              // While loop
              $region60: #{tpu_custom_call.1} parent=51 // loop_pre_header
                _
              $region61: #{tpu_custom_call.1} parent=51 // loop_header
                %s633 = sphi 0, %s635
                %p634 = scmp.ge.s32.totalorder %s633, %s626
                %s638 = sphi 0, %s645
                %s639 = sphi %s629, %s648
                %s640 = sphi %s631, %s649
              $region62: #{tpu_custom_call.1} parent=51 // loop_header_branch
                %637 = sbr.rel (%p634) target = $region66
              $region63: #{tpu_custom_call.1} parent=51 // loop_body
                %v641 = vld [vmem:[%s639] sm:%s575]
                %642 = vst [vmem:[%s640] sm:%s575] %v641
                %s643 = sadd.s32 1, %s638
                %p644 = scmp.ge.s32.totalorder %s643, %s626
                %s645 = scalar_select %p644, 0, %s643
                %s646 = smul.u32 %s645, 8
                %s647 = smul.u32 %s645, 8
                %s648 = scalar_lea.vmem %s629, %s646 [#allocation2]
                %s649 = scalar_lea.vmem %s631, %s647
              $region64: #{tpu_custom_call.1} parent=51 // loop_footer
                %s635 = sadd.s32 %s633, 1
              $region65: #{tpu_custom_call.1} parent=51 // loop_footer_branch
                %632 = sbr.rel target = $region61
              $region66: #{tpu_custom_call.1} parent=51 // loop_exit
                _
            $region52: #{tpu_custom_call.1} parent=43 // pred_fallthru
              _
          $region44: #{tpu_custom_call.1} parent=39 // pred_fallthru
            _
          %728 = vnop
        $region40: #{tpu_custom_call.1} parent=35 // pred_fallthru
          _
      $region36: #{tpu_custom_call.1} parent=5 // pred_fallthru
        _
      %p729 = scmp.le.s32.totalorder 2, %s10
      // Predicated region
      $region89: #{tpu_custom_call.1} parent=5 // pred_check
        %p730 = pneg %p729
      $region90: #{tpu_custom_call.1} parent=5 // pred_check_branch
        %732 = sbr.rel (%p730) target = $region92
      $region91: #{tpu_custom_call.1} parent=5 // pred_region
        %s733 = ssub.s32 %s10, 2
        // Predicated region
        $region93: #{tpu_custom_call.1} parent=91 // pred_check
          %p734 = pneg %p154
        $region94: #{tpu_custom_call.1} parent=91 // pred_check_branch
          %736 = sbr.rel (%p734) target = $region96
        $region95: #{tpu_custom_call.1} parent=91 // pred_region
          %s737 = sand.u32 %s139, 1
          %s738 = sand.u32 %s139, 1
          %s739 = smul.addr %s738, 128
          %s740 = scalar_lea.vmem [#allocation2], %s739
        $region96: #{tpu_custom_call.1} parent=91 // pred_fallthru
          _
      $region92: #{tpu_custom_call.1} parent=5 // pred_fallthru
        _
    $region6: #{tpu_custom_call.1} parent=1 // loop_footer
      %s14 = sadd.s32 1, %s10
    $region7: #{tpu_custom_call.1} parent=1 // loop_footer_branch
      %9 = sbr.rel target = $region3
    $region8: #{tpu_custom_call.1} parent=1 // loop_exit
      _

// kernel: tpu_custom_call.1
$region0: #{tpu_custom_call.1}
  #allocation0 [shape = 'u32[]', space=smem, size = 0x4, offset = 0x4, fixed_abs, tag = 'smem constant byte address 0x4 - core index']
  #allocation1 [shape = 'u32[144,128]{1,0:T(1,128)}', space=vmem, size = 0x12000, scoped, tag = 'internal scratch']
  %s0 = inlined_call_operand.vmem [shape: f32[2,200,16], index: 0, kind: input, shape index: {}]
  %s1 = inlined_call_operand.vmem [shape: f32[16,32], index: 1, kind: input, shape index: {}]
  %s2 = inlined_call_operand.vmem [shape: f32[2,1,32], index: 2, kind: input, shape index: {}]
  %s3 = inlined_call_operand.vmem [shape: f32[2,1,32], index: 3, kind: input, shape index: {}]
  %s4 = inlined_call_operand.vmem [shape: f32[2,200,32], index: 4, kind: output, shape index: {}]
  %s5 = sld [smem:[#allocation0]]
  $region97: #{tpu_custom_call.1} parent=0
    _
  %s7 = ssub.s32 1, %s5
  %s8 = scalar_select 0, %s7, %s5
  $region1: #{tpu_custom_call.1} parent=0
    #allocation2 [shape = 'u8[131072]{0}', space=vmem, size = 0x20000, scoped, tag = 'output window, operand 0']
    loop: start=0, step=1, limit=6
    $region2: #{tpu_custom_call.1} parent=1 // loop_pre_header
      _
    $region3: #{tpu_custom_call.1} parent=1 // loop_header
      %s10 = sphi 0, %s14
      %p11 = scmp.ge.s32.totalorder %s10, 6
      %s17 = sphi 0, %s29
      %s18 = sphi 0, %s25
      %s19 = sphi 0, %s17
      %s20 = sphi 0, %s18
      %s21 = sphi 0, %s19
      %s22 = sphi 0, %s20
      %s34 = sphi 0, %s36
      %s37 = sphi 0, %s34
      %s38 = sphi 0, %s37
      %s54 = sphi 0, %s38
      %s58 = sphi 0, %s58
      %s60 = sphi 0, %s58
      %s61 = sphi 0, %s60
      %s75 = sphi 0, %s61
      %s81 = sphi 0, %s83
      %s84 = sphi 0, %s81
      %s85 = sphi 0, %s84
      %s101 = sphi 0, %s85
      %s107 = sphi 0, %s109
      %s110 = sphi 0, %s107
      %s111 = sphi 0, %s110
      %s127 = sphi 0, %s111
      %s135 = sphi 0, %s137
      %s138 = sphi 0, %s135
      %s139 = sphi 0, %s138
      %s155 = sphi 0, %s139
    $region4: #{tpu_custom_call.1} parent=1 // loop_header_branch
      %13 = sbr.rel (%p11) target = $region8
    $region5: #{tpu_custom_call.1} parent=1 // loop_body
      %s15 = ssub.s32 %s10, 1
      %s16 = ssub.s32 %s10, 2
      %s23 = sadd.s32 1, %s18
      %p24 = scmp.ge.s32.totalorder %s23, 2
      %s25 = scalar_select %p24, 0, %s23
      %s26 = sadd.s32 1, %s17
      %s27 = scalar_select %p24, %s26, %s17
      %p28 = scmp.ge.s32.totalorder %s27, 2
      %s29 = scalar_select %p28, 0, %s27
      %s30 = ssub.s32 %s17, %s29
      %s31 = ssub.s32 %s18, %s25
      %s32 = sor.u32 %s30, %s31
      %p33 = scmp.eq.s32.totalorder %s32, 0
      %s35 = sadd.s32 %s34, 1
      %s36 = scalar_select %p33, %s34, %s35
      %p39 = pneg %p33
      %p40 = scmp.eq.s32.totalorder %s10, 3
      %p41 = por %p39, %p40
      %p42 = scmp.ne.s32.totalorder %s34, %s37
      %p43 = scmp.eq.s32.totalorder %s10, 0
      %p44 = por %p42, %p43
      %p45 = scmp.ne.s32.totalorder %s34, %s37
      %p46 = scmp.eq.s32.totalorder %s15, 3
      %p47 = por %p45, %p46
      %p48 = scmp.ne.s32.totalorder %s37, %s38
      %p49 = scmp.eq.s32.totalorder %s15, 0
      %p50 = por %p48, %p49
      %p51 = scmp.ne.s32.totalorder %s37, %s38
      %p52 = scmp.eq.s32.totalorder %s16, 3
      %p53 = por %p51, %p52
      %p55 = scmp.ne.s32.totalorder %s38, %s54
      %p56 = scmp.eq.s32.totalorder %s16, 0
      %p57 = por %p55, %p56
      %s59 = sadd.s32 %s58, 1
      %p62 = scmp.eq.s32.totalorder %s10, 3
      %p63 = scmp.ne.s32.totalorder %s58, %s60
      %p64 = scmp.eq.s32.totalorder %s10, 0
      %p65 = por %p63, %p64
      %p66 = scmp.ne.s32.totalorder %s58, %s60
      %p67 = scmp.eq.s32.totalorder %s15, 3
      %p68 = por %p66, %p67
      %p69 = scmp.ne.s32.totalorder %s60, %s61
      %p70 = scmp.eq.s32.totalorder %s15, 0
      %p71 = por %p69, %p70
      %p72 = scmp.ne.s32.totalorder %s60, %s61
      %p73 = scmp.eq.s32.totalorder %s16, 3
      %p74 = por %p72, %p73
      %p76 = scmp.ne.s32.totalorder %s61, %s75
      %p77 = scmp.eq.s32.totalorder %s16, 0
      %p78 = por %p76, %p77
      %s79 = ssub.s32 %s17, %s29
      %p80 = scmp.eq.s32.totalorder %s79, 0
      %s82 = sadd.s32 %s81, 1
      %s83 = scalar_select %p80, %s81, %s82
      %p86 = pneg %p80
      %p87 = scmp.eq.s32.totalorder %s10, 3
      %p88 = por %p86, %p87
      %p89 = scmp.ne.s32.totalorder %s81, %s84
      %p90 = scmp.eq.s32.totalorder %s10, 0
      %p91 = por %p89, %p90
      %p92 = scmp.ne.s32.totalorder %s81, %s84
      %p93 = scmp.eq.s32.totalorder %s15, 3
      %p94 = por %p92, %p93
      %p95 = scmp.ne.s32.totalorder %s84, %s85
      %p96 = scmp.eq.s32.totalorder %s15, 0
      %p97 = por %p95, %p96
      %p98 = scmp.ne.s32.totalorder %s84, %s85
      %p99 = scmp.eq.s32.totalorder %s16, 3
      %p100 = por %p98, %p99
      %p102 = scmp.ne.s32.totalorder %s85, %s101
      %p103 = scmp.eq.s32.totalorder %s16, 0
      %p104 = por %p102, %p103
      %s105 = ssub.s32 %s17, %s29
      %p106 = scmp.eq.s32.totalorder %s105, 0
      %s108 = sadd.s32 %s107, 1
      %s109 = scalar_select %p106, %s107, %s108
      %p112 = pneg %p106
      %p113 = scmp.eq.s32.totalorder %s10, 3
      %p114 = por %p112, %p113
      %p115 = scmp.ne.s32.totalorder %s107, %s110
      %p116 = scmp.eq.s32.totalorder %s10, 0
      %p117 = por %p115, %p116
      %p118 = scmp.ne.s32.totalorder %s107, %s110
      %p119 = scmp.eq.s32.totalorder %s15, 3
      %p120 = por %p118, %p119
      %p121 = scmp.ne.s32.totalorder %s110, %s111
      %p122 = scmp.eq.s32.totalorder %s15, 0
      %p123 = por %p121, %p122
      %p124 = scmp.ne.s32.totalorder %s110, %s111
      %p125 = scmp.eq.s32.totalorder %s16, 3
      %p126 = por %p124, %p125
      %p128 = scmp.ne.s32.totalorder %s111, %s127
      %p129 = scmp.eq.s32.totalorder %s16, 0
      %p130 = por %p128, %p129
      %s131 = ssub.s32 %s17, %s29
      %s132 = ssub.s32 %s18, %s25
      %s133 = sor.u32 %s131, %s132
      %p134 = scmp.eq.s32.totalorder %s133, 0
      %s136 = sadd.s32 %s135, 1
      %s137 = scalar_select %p134, %s135, %s136
      %p140 = pneg %p134
      %p141 = scmp.eq.s32.totalorder %s10, 3
      %p142 = por %p140, %p141
      %p143 = scmp.ne.s32.totalorder %s135, %s138
      %p144 = scmp.eq.s32.totalorder %s10, 0
      %p145 = por %p143, %p144
      %p146 = scmp.ne.s32.totalorder %s135, %s138
      %p147 = scmp.eq.s32.totalorder %s15, 3
      %p148 = por %p146, %p147
      %p149 = scmp.ne.s32.totalorder %s138, %s139
      %p150 = scmp.eq.s32.totalorder %s15, 0
      %p151 = por %p149, %p150
      %p152 = scmp.ne.s32.totalorder %s138, %s139
      %p153 = scmp.eq.s32.totalorder %s16, 3
      %p154 = por %p152, %p153
      %p156 = scmp.ne.s32.totalorder %s139, %s155
      %p157 = scmp.eq.s32.totalorder %s16, 0
      %p158 = por %p156, %p157
      %p159 = scmp.le.s32.totalorder 1, %s10
      %p160 = scmp.lt.s32.totalorder %s10, 5
      %p161 = pnand %p159, %p160
      %p162 = pneg %p161
      // Predicated region
      $region9: #{tpu_custom_call.1} parent=5 // pred_check
        _
      $region10: #{tpu_custom_call.1} parent=5 // pred_check_branch
        %164 = sbr.rel (%p161) target = $region12
      $region11: #{tpu_custom_call.1} parent=5 // pred_region
        %s165 = ssub.s32 %s10, 1
        // Predicated region
        $region13: #{tpu_custom_call.1} parent=11 // pred_check
          %p166 = pneg %p71
        $region14: #{tpu_custom_call.1} parent=11 // pred_check_branch
          %168 = sbr.rel (%p166) target = $region16
        $region15: #{tpu_custom_call.1} parent=11 // pred_region
          _
        $region16: #{tpu_custom_call.1} parent=11 // pred_fallthru
          _
      $region12: #{tpu_custom_call.1} parent=5 // pred_fallthru
        _
      %p169 = scmp.lt.s32.totalorder %s10, 4
      // Predicated region
      $region17: #{tpu_custom_call.1} parent=5 // pred_check
        %p170 = pneg %p169
      $region18: #{tpu_custom_call.1} parent=5 // pred_check_branch
        %172 = sbr.rel (%p170) target = $region20
      $region19: #{tpu_custom_call.1} parent=5 // pred_region
        // Predicated region
        $region21: #{tpu_custom_call.1} parent=19 // pred_check
          %p173 = pneg %p44
        $region22: #{tpu_custom_call.1} parent=19 // pred_check_branch
          %175 = sbr.rel (%p173) target = $region24
        $region23: #{tpu_custom_call.1} parent=19 // pred_region
          %s176 = smul.u32 16, %s18
          %s177 = ssub.s32 25, %s176
          %p178 = scmp.lt.s32.totalorder %s177, 16
          %s179 = scalar_select %p178, %s177, 16
          %s180 = smul.u32 128, %s179
          %p181 = scmp.lt.s32.totalorder %s17, 1
          %s182 = scalar_select %p181, %s17, 1
          %p183 = scmp.lt.s32.totalorder %s176, 24
          %s184 = scalar_select %p183, %s176, 24
          %s185 = smul.addr %s182, 25
          %s186 = sadd.s32 %s184, %s185
          %s187 = smul.addr %s186, 8
          %s188 = scalar_lea.vmem %s0, %s187
          %s189 = smul.u32 16, %s18
          %s190 = ssub.s32 25, %s189
          %p191 = scmp.lt.s32.totalorder %s190, 16
          %s192 = scalar_select %p191, %s190, 16
          %s193 = smul.u32 128, %s192
        $region24: #{tpu_custom_call.1} parent=19 // pred_fallthru
          _
        // Predicated region
        $region25: #{tpu_custom_call.1} parent=19 // pred_check
          %p194 = pneg %p91
        $region26: #{tpu_custom_call.1} parent=19 // pred_check_branch
          %196 = sbr.rel (%p194) target = $region28
        $region27: #{tpu_custom_call.1} parent=19 // pred_region
          %p197 = scmp.lt.s32.totalorder %s17, 1
          %s198 = scalar_select %p197, %s17, 1
          %s199 = scalar_lea.vmem %s2, %s198
        $region28: #{tpu_custom_call.1} parent=19 // pred_fallthru
          _
        // Predicated region
        $region29: #{tpu_custom_call.1} parent=19 // pred_check
          %p200 = pneg %p117
        $region30: #{tpu_custom_call.1} parent=19 // pred_check_branch
          %202 = sbr.rel (%p200) target = $region32
        $region31: #{tpu_custom_call.1} parent=19 // pred_region
          %p203 = scmp.lt.s32.totalorder %s17, 1
          %s204 = scalar_select %p203, %s17, 1
          %s205 = scalar_lea.vmem %s3, %s204
        $region32: #{tpu_custom_call.1} parent=19 // pred_fallthru
          _
      $region20: #{tpu_custom_call.1} parent=5 // pred_fallthru
        _
      %p206 = scmp.le.s32.totalorder 1, %s10
      %p207 = scmp.lt.s32.totalorder %s10, 5
      %p208 = pnand %p206, %p207
      %p209 = pneg %p208
      // Predicated region
      $region33: #{tpu_custom_call.1} parent=5 // pred_check
        _
      $region34: #{tpu_custom_call.1} parent=5 // pred_check_branch
        %211 = sbr.rel (%p208) target = $region36
      $region35: #{tpu_custom_call.1} parent=5 // pred_region
        %s212 = ssub.s32 %s10, 1
        %s213 = smul.u32 16, %s20
        %s214 = ssub.s32 25, %s213
        %p215 = scmp.lt.s32.totalorder %s214, 16
        %s216 = scalar_select %p215, %s214, 16
        %s217 = smul.u32 128, %s216
        %p218 = scmp.lt.s32.totalorder %s19, 1
        %s219 = scalar_select %p218, %s19, 1
        %p220 = scmp.lt.s32.totalorder %s213, 24
        %s221 = scalar_select %p220, %s213, 24
        %s222 = smul.addr %s219, 25
        %s223 = sadd.s32 %s221, %s222
        %s224 = smul.addr %s223, 8
        %s225 = scalar_lea.vmem %s0, %s224
        %p226 = pneg %p50
        %p227 = pneg %p47
        %p228 = pneg %p71
        %p229 = pneg %p68
        %p230 = scmp.lt.s32.totalorder %s19, 1
        %s231 = scalar_select %p230, %s19, 1
        %s232 = scalar_lea.vmem %s2, %s231
        %p233 = pneg %p97
        %p234 = pneg %p94
        %p235 = scmp.lt.s32.totalorder %s19, 1
        %s236 = scalar_select %p235, %s19, 1
        %s237 = scalar_lea.vmem %s3, %s236
        %p238 = pneg %p123
        %p239 = pneg %p120
        %p240 = pneg %p151
        %p241 = pneg %p148
        %s242 = sand.u32 %s138, 1
        %s243 = sand.u32 %s138, 1
        %s244 = smul.addr %s243, 128
        %s245 = scalar_lea.vmem [#allocation2], %s244
        %s246 = smul.u32 16, %s20
        %s247 = ssub.s32 25, %s246
        %p248 = scmp.lt.s32.totalorder %s247, 16
        %s249 = scalar_select %p248, %s247, 16
        %s250 = smul.u32 128, %s249
        %p251 = scmp.lt.s32.totalorder %s19, 1
        %s252 = scalar_select %p251, %s19, 1
        %p253 = scmp.lt.s32.totalorder %s246, 24
        %s254 = scalar_select %p253, %s246, 24
        %s255 = smul.addr %s252, 25
        %s256 = sadd.s32 %s254, %s255
        %s257 = smul.addr %s256, 8
        %s258 = scalar_lea.vmem %s0, %s257
        %s259 = smul.u32 16, %s20
        %s260 = ssub.s32 25, %s259
        %p261 = scmp.lt.s32.totalorder %s260, 16
        %s262 = scalar_select %p261, %s260, 16
        %s263 = smul.u32 128, %s262
        %p264 = scmp.lt.s32.totalorder %s19, 1
        %s265 = scalar_select %p264, %s19, 1
        %s266 = scalar_lea.vmem %s2, %s265
        %p267 = scmp.lt.s32.totalorder %s19, 1
        %s268 = scalar_select %p267, %s19, 1
        %s269 = scalar_lea.vmem %s3, %s268
        %s270 = smul.u32 16, %s20
        %s271 = ssub.s32 25, %s270
        %p272 = scmp.lt.s32.totalorder %s271, 16
        %s273 = scalar_select %p272, %s271, 16
        %s274 = smul.u32 128, %s273
        %v275 = vld [vmem:[%s258] sm:$0xff]
        %v276 = vld [vmem:[%s258 + $0x8] sm:$0xff]
        %v277 = vld [vmem:[%s258 + $0x10] sm:$0xff]
        %v278 = vld [vmem:[%s258 + $0x18] sm:$0xff]
        %v279 = vld [vmem:[%s258 + $0x20] sm:$0xff]
        %v280 = vld [vmem:[%s258 + $0x28] sm:$0xff]
        %v281 = vld [vmem:[%s258 + $0x30] sm:$0xff]
        %v282 = vld [vmem:[%s258 + $0x38] sm:$0xff]
        %v283 = vld [vmem:[%s258 + $0x40] sm:$0xff]
        %v284 = vld [vmem:[%s258 + $0x48] sm:$0xff]
        %v285 = vld [vmem:[%s258 + $0x50] sm:$0xff]
        %v286 = vld [vmem:[%s258 + $0x58] sm:$0xff]
        %v287 = vld [vmem:[%s258 + $0x60] sm:$0xff]
        %v288 = vld [vmem:[%s258 + $0x68] sm:$0xff]
        %v289 = vld [vmem:[%s258 + $0x70] sm:$0xff]
        %v290 = vld [vmem:[%s258 + $0x78] sm:$0xff]
        %v291 = vld [vmem:[%s1] sm:$0xff]
        %v292 = vld [vmem:[%s1 + $0x8] sm:$0xff]
        %vm293 = vcmask 130048
        %v295 = vsel %vm293, %v275, 0
        %v298 = vsel %vm293, %v276, 0
        %v301 = vsel %vm293, %v277, 0
        %v304 = vsel %vm293, %v278, 0
        %v307 = vsel %vm293, %v279, 0
        %v310 = vsel %vm293, %v280, 0
        %v313 = vsel %vm293, %v281, 0
        %v316 = vsel %vm293, %v282, 0
        %v319 = vsel %vm293, %v283, 0
        %v322 = vsel %vm293, %v284, 0
        %v325 = vsel %vm293, %v285, 0
        %v328 = vsel %vm293, %v286, 0
        %v331 = vsel %vm293, %v287, 0
        %v334 = vsel %vm293, %v288, 0
        %v337 = vsel %vm293, %v289, 0
        %v340 = vsel %vm293, %v290, 0
        %342 = vmatprep.subr.mxu0 0.0
        %343 = vmatpush1.msra.mxu0 0.0
        %344 = vmatprep.subr.mxu0 0.0
        %345 = vmatpush1.msra.mxu0 0.0
        %346 = vmatprep.subr.mxu0 0.0
        %347 = vmatpush1.msra.mxu0 0.0
        %348 = vmatprep.subr.mxu0 0.0
        %349 = vmatpush1.msra.mxu0 0.0
        %350 = vmatprep.subr.mxu0 0.0
        %351 = vmatpush1.msra.mxu0 0.0
        %352 = vmatprep.subr.mxu0 0.0
        %353 = vmatpush1.msra.mxu0 0.0
        %354 = vmatprep.subr.mxu0 0.0
        %355 = vmatpush1.msra.mxu0 0.0
        %356 = vmatprep.subr.mxu0 0.0
        %357 = vmatpush1.msra.mxu0 0.0
        %358 = vmatprep.subr.mxu0 0.0
        %359 = vmatpush1.msra.mxu0 0.0
        %360 = vmatprep.subr.mxu0 0.0
        %361 = vmatpush1.msra.mxu0 0.0
        %362 = vmatprep.subr.mxu0 0.0
        %363 = vmatpush1.msra.mxu0 0.0
        %364 = vmatprep.subr.mxu0 0.0
        %365 = vmatpush1.msra.mxu0 0.0
        %366 = vmatprep.subr.mxu0 0.0
        %367 = vmatpush1.msra.mxu0 0.0
        %368 = vmatprep.subr.mxu0 0.0
        %369 = vmatpush1.msra.mxu0 0.0
        %370 = vmatprep.subr.mxu0 0.0
        %371 = vmatpush1.msra.mxu0 %v292
        %372 = vmatprep.subr.mxu0 0.0
        %373 = vmatpush1.msra.mxu0 %v291
        %374 = vmatprep.subr.mxu0 0.0
        %375 = vmatpush2.msra.mxu0 0.0
        %376 = vmatprep.subr.mxu0 0.0
        %377 = vmatpush2.msra.mxu0 0.0
        %378 = vmatprep.subr.mxu0 0.0
        %379 = vmatpush2.msra.mxu0 0.0
        %380 = vmatprep.subr.mxu0 0.0
        %381 = vmatpush2.msra.mxu0 0.0
        %382 = vmatprep.subr.mxu0 0.0
        %383 = vmatpush2.msra.mxu0 0.0
        %384 = vmatprep.subr.mxu0 0.0
        %385 = vmatpush2.msra.mxu0 0.0
        %386 = vmatprep.subr.mxu0 0.0
        %387 = vmatpush2.msra.mxu0 0.0
        %388 = vmatprep.subr.mxu0 0.0
        %389 = vmatpush2.msra.mxu0 0.0
        %390 = vmatprep.subr.mxu0 0.0
        %391 = vmatpush2.msra.mxu0 0.0
        %392 = vmatprep.subr.mxu0 0.0
        %393 = vmatpush2.msra.mxu0 0.0
        %394 = vmatprep.subr.mxu0 0.0
        %395 = vmatpush2.msra.mxu0 0.0
        %396 = vmatprep.subr.mxu0 0.0
        %397 = vmatpush2.msra.mxu0 0.0
        %398 = vmatprep.subr.mxu0 0.0
        %399 = vmatpush2.msra.mxu0 0.0
        %400 = vmatprep.subr.mxu0 0.0
        %401 = vmatpush2.msra.mxu0 0.0
        %402 = vmatprep.subr.mxu0 0.0
        %403 = vmatpush2.msra.mxu0 0.0
        %404 = vmatprep.subr.mxu0 0.0
        %405 = vmatpush2.msra.mxu0 0.0
        %406 = vmatprep.mubr.f32.mxu0 0.0
        %407 = vmatmul.mubr.f32.gmra.mxu0 %v295
        %v408 = vpop.f32.mrf.mxu0
        %v409 = vadd.f32 0.0, %v408
        %v410 = vpop.f32.mrf.mxu0
        %411 = vmatprep.mubr.f32.mxu0 0.0
        %412 = vmatmul.mubr.f32.gmra.mxu0 %v298
        %v413 = vpop.f32.mrf.mxu0
        %v414 = vadd.f32 0.0, %v413
        %v415 = vpop.f32.mrf.mxu0
        %416 = vmatprep.mubr.f32.mxu0 0.0
        %417 = vmatmul.mubr.f32.gmra.mxu0 %v301
        %v418 = vpop.f32.mrf.mxu0
        %v419 = vadd.f32 0.0, %v418
        %v420 = vpop.f32.mrf.mxu0
        %421 = vmatprep.mubr.f32.mxu0 0.0
        %422 = vmatmul.mubr.f32.gmra.mxu0 %v304
        %v423 = vpop.f32.mrf.mxu0
        %v424 = vadd.f32 0.0, %v423
        %v425 = vpop.f32.mrf.mxu0
        %426 = vmatprep.mubr.f32.mxu0 0.0
        %427 = vmatmul.mubr.f32.gmra.mxu0 %v307
        %v428 = vpop.f32.mrf.mxu0
        %v429 = vadd.f32 0.0, %v428
        %v430 = vpop.f32.mrf.mxu0
        %431 = vmatprep.mubr.f32.mxu0 0.0
        %432 = vmatmul.mubr.f32.gmra.mxu0 %v310
        %v433 = vpop.f32.mrf.mxu0
        %v434 = vadd.f32 0.0, %v433
        %v435 = vpop.f32.mrf.mxu0
        %436 = vmatprep.mubr.f32.mxu0 0.0
        %437 = vmatmul.mubr.f32.gmra.mxu0 %v313
        %v438 = vpop.f32.mrf.mxu0
        %v439 = vadd.f32 0.0, %v438
        %v440 = vpop.f32.mrf.mxu0
        %441 = vmatprep.mubr.f32.mxu0 0.0
        %442 = vmatmul.mubr.f32.gmra.mxu0 %v316
        %v443 = vpop.f32.mrf.mxu0
        %v444 = vadd.f32 0.0, %v443
        %v445 = vpop.f32.mrf.mxu0
        %446 = vmatprep.mubr.f32.mxu0 0.0
        %447 = vmatmul.mubr.f32.gmra.mxu0 %v319
        %v448 = vpop.f32.mrf.mxu0
        %v449 = vadd.f32 0.0, %v448
        %v450 = vpop.f32.mrf.mxu0
        %451 = vmatprep.mubr.f32.mxu0 0.0
        %452 = vmatmul.mubr.f32.gmra.mxu0 %v322
        %v453 = vpop.f32.mrf.mxu0
        %v454 = vadd.f32 0.0, %v453
        %v455 = vpop.f32.mrf.mxu0
        %456 = vmatprep.mubr.f32.mxu0 0.0
        %457 = vmatmul.mubr.f32.gmra.mxu0 %v325
        %v458 = vpop.f32.mrf.mxu0
        %v459 = vadd.f32 0.0, %v458
        %v460 = vpop.f32.mrf.mxu0
        %461 = vmatprep.mubr.f32.mxu0 0.0
        %462 = vmatmul.mubr.f32.gmra.mxu0 %v328
        %v463 = vpop.f32.mrf.mxu0
        %v464 = vadd.f32 0.0, %v463
        %v465 = vpop.f32.mrf.mxu0
        %466 = vmatprep.mubr.f32.mxu0 0.0
        %467 = vmatmul.mubr.f32.gmra.mxu0 %v331
        %v468 = vpop.f32.mrf.mxu0
        %v469 = vadd.f32 0.0, %v468
        %v470 = vpop.f32.mrf.mxu0
        %471 = vmatprep.mubr.f32.mxu0 0.0
        %472 = vmatmul.mubr.f32.gmra.mxu0 %v334
        %v473 = vpop.f32.mrf.mxu0
        %v474 = vadd.f32 0.0, %v473
        %v475 = vpop.f32.mrf.mxu0
        %476 = vmatprep.mubr.f32.mxu0 0.0
        %477 = vmatmul.mubr.f32.gmra.mxu0 %v337
        %v478 = vpop.f32.mrf.mxu0
        %v479 = vadd.f32 0.0, %v478
        %v480 = vpop.f32.mrf.mxu0
        %481 = vmatprep.mubr.f32.mxu0 0.0
        %482 = vmatmul.mubr.f32.gmra.mxu0 %v340
        %v483 = vpop.f32.mrf.mxu0
        %v484 = vadd.f32 0.0, %v483
        %v485 = vpop.f32.mrf.mxu0
        %486 = vdwg.mxu0
        %v487 = vld [vmem:[%s266] sm:$0x1]
        %v489 = vlaneseq
        %v490 = vshrl.u32 %v489, 7
        %v491 = vsub.s32 0, %v490
        %v492 = vrot.slane %v487, %v491
        %v494 = vmul.f32 %v409, %v492
        %v495 = vmul.f32 %v414, %v492
        %v496 = vmul.f32 %v419, %v492
        %v497 = vmul.f32 %v424, %v492
        %v498 = vmul.f32 %v429, %v492
        %v499 = vmul.f32 %v434, %v492
        %v500 = vmul.f32 %v439, %v492
        %v501 = vmul.f32 %v444, %v492
        %v502 = vmul.f32 %v449, %v492
        %v503 = vmul.f32 %v454, %v492
        %v504 = vmul.f32 %v459, %v492
        %v505 = vmul.f32 %v464, %v492
        %v506 = vmul.f32 %v469, %v492
        %v507 = vmul.f32 %v474, %v492
        %v508 = vmul.f32 %v479, %v492
        %v509 = vmul.f32 %v484, %v492
        %v510 = vld [vmem:[%s269] sm:$0x1]
        %v512 = vlaneseq
        %v513 = vshrl.u32 %v512, 7
        %v514 = vsub.s32 0, %v513
        %v515 = vrot.slane %v510, %v514
        %v517 = vadd.f32 %v494, %v515
        %v518 = vadd.f32 %v495, %v515
        %v519 = vadd.f32 %v496, %v515
        %v520 = vadd.f32 %v497, %v515
        %v521 = vadd.f32 %v498, %v515
        %v522 = vadd.f32 %v499, %v515
        %v523 = vadd.f32 %v500, %v515
        %v524 = vadd.f32 %v501, %v515
        %v525 = vadd.f32 %v502, %v515
        %v526 = vadd.f32 %v503, %v515
        %v527 = vadd.f32 %v504, %v515
        %v528 = vadd.f32 %v505, %v515
        %v529 = vadd.f32 %v506, %v515
        %v530 = vadd.f32 %v507, %v515
        %v531 = vadd.f32 %v508, %v515
        %v532 = vadd.f32 %v509, %v515
        %vm533 = vcmask 261120
        %534 = vst.msk [vmem:[%s245] sm:$0xff] %vm533, %v517
        %535 = vst.msk [vmem:[%s245 + $0x8] sm:$0xff] %vm533, %v518
        %536 = vst.msk [vmem:[%s245 + $0x10] sm:$0xff] %vm533, %v519
        %537 = vst.msk [vmem:[%s245 + $0x18] sm:$0xff] %vm533, %v520
        %538 = vst.msk [vmem:[%s245 + $0x20] sm:$0xff] %vm533, %v521
        %539 = vst.msk [vmem:[%s245 + $0x28] sm:$0xff] %vm533, %v522
        %540 = vst.msk [vmem:[%s245 + $0x30] sm:$0xff] %vm533, %v523
        %541 = vst.msk [vmem:[%s245 + $0x38] sm:$0xff] %vm533, %v524
        %542 = vst.msk [vmem:[%s245 + $0x40] sm:$0xff] %vm533, %v525
        %543 = vst.msk [vmem:[%s245 + $0x48] sm:$0xff] %vm533, %v526
        %544 = vst.msk [vmem:[%s245 + $0x50] sm:$0xff] %vm533, %v527
        %545 = vst.msk [vmem:[%s245 + $0x58] sm:$0xff] %vm533, %v528
        %546 = vst.msk [vmem:[%s245 + $0x60] sm:$0xff] %vm533, %v529
        %547 = vst.msk [vmem:[%s245 + $0x68] sm:$0xff] %vm533, %v530
        %548 = vst.msk [vmem:[%s245 + $0x70] sm:$0xff] %vm533, %v531
        %549 = vst.msk [vmem:[%s245 + $0x78] sm:$0xff] %vm533, %v532
        %s550 = sand.u32 %s138, 1
        %s551 = sand.u32 %s138, 1
        %s552 = smul.addr %s551, 128
        %s553 = scalar_lea.vmem [#allocation2], %s552
        // Predicated region
        $region37: #{tpu_custom_call.1} parent=35 // pred_check
          %p554 = pneg %p148
        $region38: #{tpu_custom_call.1} parent=35 // pred_check_branch
          %556 = sbr.rel (%p554) target = $region40
        $region39: #{tpu_custom_call.1} parent=35 // pred_region
          %s557 = smul.u32 16, %s20
          %s558 = ssub.s32 25, %s557
          %p559 = scmp.lt.s32.totalorder %s558, 16
          %s560 = scalar_select %p559, %s558, 16
          %s561 = smul.u32 128, %s560
          %p562 = scmp.ne.s32.totalorder 0, %s561
          %s563 = smul.addr %s19, 25
          %s564 = sadd.s32 %s557, %s563
          %s565 = smul.addr %s564, 8
          %s566 = scalar_lea.vmem %s4, %s565
          // Predicated region
          $region41: #{tpu_custom_call.1} parent=39 // pred_check
            %p567 = pneg %p562
          $region42: #{tpu_custom_call.1} parent=39 // pred_check_branch
            %569 = sbr.rel (%p567) target = $region44
          $region43: #{tpu_custom_call.1} parent=39 // pred_region
            // Predicated region
            $region45: #{tpu_custom_call.1} parent=43 // pred_check
              _
            $region46: #{tpu_custom_call.1} parent=43 // pred_check_branch
              %571 = sbr.rel (0) target = $region48
            $region47: #{tpu_custom_call.1} parent=43 // pred_region
              // Predicated region
              $region67: #{tpu_custom_call.1} parent=47 // pred_check
                _
              $region68: #{tpu_custom_call.1} parent=47 // pred_check_branch
                %651 = sbr.rel (0) target = $region70
              $region69: #{tpu_custom_call.1} parent=47 // pred_region
                %s652 = sshrl.u32 %s560, 4
                // While loop
                $region71: #{tpu_custom_call.1} parent=69 // loop_pre_header
                  _
                $region72: #{tpu_custom_call.1} parent=69 // loop_header
                  %s654 = sphi 0, %s656
                  %p655 = scmp.ge.s32.totalorder %s654, %s652
                  %s659 = sphi 0, %s696
                  %s660 = sphi %s553, %s699
                  %s661 = sphi %s566, %s700
                $region73: #{tpu_custom_call.1} parent=69 // loop_header_branch
                  %658 = sbr.rel (%p655) target = $region77
                $region74: #{tpu_custom_call.1} parent=69 // loop_body
                  %v662 = vld [vmem:[%s660] sm:$0xff]
                  %663 = vst [vmem:[%s661] sm:$0xff] %v662
                  %v664 = vld [vmem:[%s660 + $0x8] sm:$0xff]
                  %665 = vst [vmem:[%s661 + $0x8] sm:$0xff] %v664
                  %v666 = vld [vmem:[%s660 + $0x10] sm:$0xff]
                  %667 = vst [vmem:[%s661 + $0x10] sm:$0xff] %v666
                  %v668 = vld [vmem:[%s660 + $0x18] sm:$0xff]
                  %669 = vst [vmem:[%s661 + $0x18] sm:$0xff] %v668
                  %v670 = vld [vmem:[%s660 + $0x20] sm:$0xff]
                  %671 = vst [vmem:[%s661 + $0x20] sm:$0xff] %v670
                  %v672 = vld [vmem:[%s660 + $0x28] sm:$0xff]
                  %673 = vst [vmem:[%s661 + $0x28] sm:$0xff] %v672
                  %v674 = vld [vmem:[%s660 + $0x30] sm:$0xff]
                  %675 = vst [vmem:[%s661 + $0x30] sm:$0xff] %v674
                  %v676 = vld [vmem:[%s660 + $0x38] sm:$0xff]
                  %677 = vst [vmem:[%s661 + $0x38] sm:$0xff] %v676
                  %v678 = vld [vmem:[%s660 + $0x40] sm:$0xff]
                  %679 = vst [vmem:[%s661 + $0x40] sm:$0xff] %v678
                  %v680 = vld [vmem:[%s660 + $0x48] sm:$0xff]
                  %681 = vst [vmem:[%s661 + $0x48] sm:$0xff] %v680
                  %v682 = vld [vmem:[%s660 + $0x50] sm:$0xff]
                  %683 = vst [vmem:[%s661 + $0x50] sm:$0xff] %v682
                  %v684 = vld [vmem:[%s660 + $0x58] sm:$0xff]
                  %685 = vst [vmem:[%s661 + $0x58] sm:$0xff] %v684
                  %v686 = vld [vmem:[%s660 + $0x60] sm:$0xff]
                  %687 = vst [vmem:[%s661 + $0x60] sm:$0xff] %v686
                  %v688 = vld [vmem:[%s660 + $0x68] sm:$0xff]
                  %689 = vst [vmem:[%s661 + $0x68] sm:$0xff] %v688
                  %v690 = vld [vmem:[%s660 + $0x70] sm:$0xff]
                  %691 = vst [vmem:[%s661 + $0x70] sm:$0xff] %v690
                  %v692 = vld [vmem:[%s660 + $0x78] sm:$0xff]
                  %693 = vst [vmem:[%s661 + $0x78] sm:$0xff] %v692
                  %s694 = sadd.s32 1, %s659
                  %p695 = scmp.ge.s32.totalorder %s694, %s652
                  %s696 = scalar_select %p695, 0, %s694
                  %s697 = smul.u32 %s696, 128
                  %s698 = smul.u32 %s696, 128
                  %s699 = scalar_lea.vmem %s553, %s697 [#allocation2]
                  %s700 = scalar_lea.vmem %s566, %s698
                $region75: #{tpu_custom_call.1} parent=69 // loop_footer
                  %s656 = sadd.s32 %s654, 1
                $region76: #{tpu_custom_call.1} parent=69 // loop_footer_branch
                  %653 = sbr.rel target = $region72
                $region77: #{tpu_custom_call.1} parent=69 // loop_exit
                  _
                %s701 = sshrl.u32 %s560, 4
                %s702 = sand.u32 %s560, 15
                %s703 = smul.u32 %s701, 16
                %s704 = smul.u32 8, %s703
                %s705 = scalar_lea.vmem %s553, %s704 [#allocation2]
                %s706 = smul.u32 8, %s703
                %s707 = scalar_lea.vmem %s566, %s706
                // While loop
                $region78: #{tpu_custom_call.1} parent=69 // loop_pre_header
                  _
                $region79: #{tpu_custom_call.1} parent=69 // loop_header
                  %s709 = sphi 0, %s711
                  %p710 = scmp.ge.s32.totalorder %s709, %s702
                  %s714 = sphi 0, %s721
                  %s715 = sphi %s705, %s724
                  %s716 = sphi %s707, %s725
                $region80: #{tpu_custom_call.1} parent=69 // loop_header_branch
                  %713 = sbr.rel (%p710) target = $region84
                $region81: #{tpu_custom_call.1} parent=69 // loop_body
                  %v717 = vld [vmem:[%s715] sm:$0xff]
                  %718 = vst [vmem:[%s716] sm:$0xff] %v717
                  %s719 = sadd.s32 1, %s714
                  %p720 = scmp.ge.s32.totalorder %s719, %s702
                  %s721 = scalar_select %p720, 0, %s719
                  %s722 = smul.u32 %s721, 8
                  %s723 = smul.u32 %s721, 8
                  %s724 = scalar_lea.vmem %s705, %s722 [#allocation2]
                  %s725 = scalar_lea.vmem %s707, %s723
                $region82: #{tpu_custom_call.1} parent=69 // loop_footer
                  %s711 = sadd.s32 %s709, 1
                $region83: #{tpu_custom_call.1} parent=69 // loop_footer_branch
                  %708 = sbr.rel target = $region79
                $region84: #{tpu_custom_call.1} parent=69 // loop_exit
                  _
              $region70: #{tpu_custom_call.1} parent=47 // pred_fallthru
                _
              // Predicated region
              $region85: #{tpu_custom_call.1} parent=47 // pred_check
                _
              $region86: #{tpu_custom_call.1} parent=47 // pred_check_branch
                %727 = sbr.rel target = $region88
              $region87: #{tpu_custom_call.1} parent=47 // pred_region
                _
              $region88: #{tpu_custom_call.1} parent=47 // pred_fallthru
                _
            $region48: #{tpu_custom_call.1} parent=43 // pred_fallthru
              _
            // Predicated region
            $region49: #{tpu_custom_call.1} parent=43 // pred_check
              _
            $region50: #{tpu_custom_call.1} parent=43 // pred_check_branch
              %573 = sbr.rel target = $region52
            $region51: #{tpu_custom_call.1} parent=43 // pred_region
              %s575 = ssub.s32 256, 1
              %s576 = sshrl.u32 %s560, 4
              // While loop
              $region53: #{tpu_custom_call.1} parent=51 // loop_pre_header
                _
              $region54: #{tpu_custom_call.1} parent=51 // loop_header
                %s578 = sphi 0, %s580
                %p579 = scmp.ge.s32.totalorder %s578, %s576
                %s583 = sphi 0, %s620
                %s584 = sphi %s553, %s623
                %s585 = sphi %s566, %s624
              $region55: #{tpu_custom_call.1} parent=51 // loop_header_branch
                %582 = sbr.rel (%p579) target = $region59
              $region56: #{tpu_custom_call.1} parent=51 // loop_body
                %v586 = vld [vmem:[%s584] sm:%s575]
                %587 = vst [vmem:[%s585] sm:%s575] %v586
                %v588 = vld [vmem:[%s584 + $0x8] sm:%s575]
                %589 = vst [vmem:[%s585 + $0x8] sm:%s575] %v588
                %v590 = vld [vmem:[%s584 + $0x10] sm:%s575]
                %591 = vst [vmem:[%s585 + $0x10] sm:%s575] %v590
                %v592 = vld [vmem:[%s584 + $0x18] sm:%s575]
                %593 = vst [vmem:[%s585 + $0x18] sm:%s575] %v592
                %v594 = vld [vmem:[%s584 + $0x20] sm:%s575]
                %595 = vst [vmem:[%s585 + $0x20] sm:%s575] %v594
                %v596 = vld [vmem:[%s584 + $0x28] sm:%s575]
                %597 = vst [vmem:[%s585 + $0x28] sm:%s575] %v596
                %v598 = vld [vmem:[%s584 + $0x30] sm:%s575]
                %599 = vst [vmem:[%s585 + $0x30] sm:%s575] %v598
                %v600 = vld [vmem:[%s584 + $0x38] sm:%s575]
                %601 = vst [vmem:[%s585 + $0x38] sm:%s575] %v600
                %v602 = vld [vmem:[%s584 + $0x40] sm:%s575]
                %603 = vst [vmem:[%s585 + $0x40] sm:%s575] %v602
                %v604 = vld [vmem:[%s584 + $0x48] sm:%s575]
                %605 = vst [vmem:[%s585 + $0x48] sm:%s575] %v604
                %v606 = vld [vmem:[%s584 + $0x50] sm:%s575]
                %607 = vst [vmem:[%s585 + $0x50] sm:%s575] %v606
                %v608 = vld [vmem:[%s584 + $0x58] sm:%s575]
                %609 = vst [vmem:[%s585 + $0x58] sm:%s575] %v608
                %v610 = vld [vmem:[%s584 + $0x60] sm:%s575]
                %611 = vst [vmem:[%s585 + $0x60] sm:%s575] %v610
                %v612 = vld [vmem:[%s584 + $0x68] sm:%s575]
                %613 = vst [vmem:[%s585 + $0x68] sm:%s575] %v612
                %v614 = vld [vmem:[%s584 + $0x70] sm:%s575]
                %615 = vst [vmem:[%s585 + $0x70] sm:%s575] %v614
                %v616 = vld [vmem:[%s584 + $0x78] sm:%s575]
                %617 = vst [vmem:[%s585 + $0x78] sm:%s575] %v616
                %s618 = sadd.s32 1, %s583
                %p619 = scmp.ge.s32.totalorder %s618, %s576
                %s620 = scalar_select %p619, 0, %s618
                %s621 = smul.u32 %s620, 128
                %s622 = smul.u32 %s620, 128
                %s623 = scalar_lea.vmem %s553, %s621 [#allocation2]
                %s624 = scalar_lea.vmem %s566, %s622
              $region57: #{tpu_custom_call.1} parent=51 // loop_footer
                %s580 = sadd.s32 %s578, 1
              $region58: #{tpu_custom_call.1} parent=51 // loop_footer_branch
                %577 = sbr.rel target = $region54
              $region59: #{tpu_custom_call.1} parent=51 // loop_exit
                _
              %s625 = sshrl.u32 %s560, 4
              %s626 = sand.u32 %s560, 15
              %s627 = smul.u32 %s625, 16
              %s628 = smul.u32 8, %s627
              %s629 = scalar_lea.vmem %s553, %s628 [#allocation2]
              %s630 = smul.u32 8, %s627
              %s631 = scalar_lea.vmem %s566, %s630
              // While loop
              $region60: #{tpu_custom_call.1} parent=51 // loop_pre_header
                _
              $region61: #{tpu_custom_call.1} parent=51 // loop_header
                %s633 = sphi 0, %s635
                %p634 = scmp.ge.s32.totalorder %s633, %s626
                %s638 = sphi 0, %s645
                %s639 = sphi %s629, %s648
                %s640 = sphi %s631, %s649
              $region62: #{tpu_custom_call.1} parent=51 // loop_header_branch
                %637 = sbr.rel (%p634) target = $region66
              $region63: #{tpu_custom_call.1} parent=51 // loop_body
                %v641 = vld [vmem:[%s639] sm:%s575]
                %642 = vst [vmem:[%s640] sm:%s575] %v641
                %s643 = sadd.s32 1, %s638
                %p644 = scmp.ge.s32.totalorder %s643, %s626
                %s645 = scalar_select %p644, 0, %s643
                %s646 = smul.u32 %s645, 8
                %s647 = smul.u32 %s645, 8
                %s648 = scalar_lea.vmem %s629, %s646 [#allocation2]
                %s649 = scalar_lea.vmem %s631, %s647
              $region64: #{tpu_custom_call.1} parent=51 // loop_footer
                %s635 = sadd.s32 %s633, 1
              $region65: #{tpu_custom_call.1} parent=51 // loop_footer_branch
                %632 = sbr.rel target = $region61
              $region66: #{tpu_custom_call.1} parent=51 // loop_exit
                _
            $region52: #{tpu_custom_call.1} parent=43 // pred_fallthru
              _
          $region44: #{tpu_custom_call.1} parent=39 // pred_fallthru
            _
          %728 = vnop
        $region40: #{tpu_custom_call.1} parent=35 // pred_fallthru
          _
      $region36: #{tpu_custom_call.1} parent=5 // pred_fallthru
        _
      %p729 = scmp.le.s32.totalorder 2, %s10
      // Predicated region
      $region89: #{tpu_custom_call.1} parent=5 // pred_check
        %p730 = pneg %p729
      $region90: #{tpu_custom_call.1} parent=5 // pred_check_branch
        %732 = sbr.rel (%p730) target = $region92
      $region91: #{tpu_custom_call.1} parent=5 // pred_region
        %s733 = ssub.s32 %s10, 2
        // Predicated region
        $region93: #{tpu_custom_call.1} parent=91 // pred_check
          %p734 = pneg %p154
        $region94: #{tpu_custom_call.1} parent=91 // pred_check_branch
          %736 = sbr.rel (%p734) target = $region96
        $region95: #{tpu_custom_call.1} parent=91 // pred_region
          %s737 = sand.u32 %s139, 1
          %s738 = sand.u32 %s139, 1
          %s739 = smul.addr %s738, 128
          %s740 = scalar_lea.vmem [#allocation2], %s739
        $region96: #{tpu_custom_call.1} parent=91 // pred_fallthru
          _
      $region92: #{tpu_custom_call.1} parent=5 // pred_fallthru
        _
    $region6: #{tpu_custom_call.1} parent=1 // loop_footer
      %s14 = sadd.s32 1, %s10
    $region7: #{tpu_custom_call.1} parent=1 // loop_footer_branch
      %9 = sbr.rel target = $region3
    $region8: #{tpu_custom_call.1} parent=1 // loop_exit
      _

</llo_original>
